<compile_context>
chip_gen: v6e
topology: v6e:2x2x1
jax: 0.10.0
libtpu: 0.0.40
codegen_flags: <defaults>
</compile_context>

<pallas_src>
import math
import functools

import jax
import jax.numpy as jnp
from jax.experimental import pallas as pl
from jax.experimental.pallas import tpu as pltpu

SQRT2 = math.sqrt(2.0)
INV_SQRT2 = 1.0 / math.sqrt(2.0)


def _round_up(x, m):
    return ((x + m - 1) // m) * m


# ---------------------------------------------------------------------------
# Kernels
# ---------------------------------------------------------------------------
def _conv1_kernel(x_ref, w_ref, b_ref, o_ref, p_ref, *, kh, kw, ci, pitch, wide):
    """EqualConv2d 3x3/s1/p1 + FusedLeakyReLU on a row-pitched flat image.

    x_ref : (1, Ci, Lin)     zero-padded input, flat layout x[ci, y*pitch + x]
    w_ref : (Co, kh*kw*Ci)   flattened weights, col = (a*kw + b)*Ci + ci
    b_ref : (Co, 1)          FusedLeakyReLU bias
    o_ref : (1, Co, wide)    wide output, col = y*pitch + x (x >= Wout is junk)
    p_ref : (kh*kw*Ci, wide) VMEM scratch: im2col patch matrix
    """
    # im2col: every tap is a dense, unit-stride slice of the flat padded image.
    for a in range(kh):
        for b in range(kw):
            k = a * kw + b
            p_ref[pl.ds(k * ci, ci), :] = x_ref[0, :, pl.ds(a * pitch + b, wide)]
    # One fat matmul: (Co, kh*kw*Ci) x (kh*kw*Ci, wide), f32 accumulation.
    acc = jnp.dot(w_ref[...], p_ref[...], preferred_element_type=jnp.float32)
    acc = acc + b_ref[...]
    acc = jnp.where(acc >= 0.0, acc, 0.2 * acc) * SQRT2        # fused_leaky_relu
    o_ref[0] = acc.astype(o_ref.dtype)                         # bf16 store


def _down_kernel(h_ref, x_ref, w2_ref, b2_ref, ws_ref, o_ref, p2_ref, ps_ref,
                 *, c4, pitch, wide):
    """Fused [blur+conv2+bias+LeakyReLU] + [blur+skip conv] + residual/sqrt(2).

    h_ref : (1, 4Ci, Lh)   phase-split, padded conv1 activation (bf16), flat
    x_ref : (1, 4Ci, Lx)   phase-split, padded block input (f32), flat
    w2_ref: (Co, 3*3*4Ci)  composed conv2 weights (blur folded in, phase-split)
    b2_ref: (Co, 1)        FusedLeakyReLU bias
    ws_ref: (Co, 2*2*4Ci)  composed skip weights
    o_ref : (1, Co, wide)  wide output, col = p*pitch + q (q >= Wout is junk)
    """
    # conv2: composed 6x6/s2 conv == 3x3/s1 conv over 4*Ci phase channels.
    for s in range(3):
        for m in range(3):
            k = s * 3 + m
            p2_ref[pl.ds(k * c4, c4), :] = (
                h_ref[0, :, pl.ds(s * pitch + m, wide)].astype(jnp.float32))
    out = jnp.dot(w2_ref[...], p2_ref[...], preferred_element_type=jnp.float32)
    out = out + b2_ref[...]
    out = jnp.where(out >= 0.0, out, 0.2 * out) * SQRT2        # fused_leaky_relu

    # skip: composed 4x4/s2 conv == 2x2/s1 conv over 4*Ci phase channels.
    for s in range(2):
        for m in range(2):
            k = s * 2 + m
            ps_ref[pl.ds(k * c4, c4), :] = x_ref[0, :, pl.ds(s * pitch + m, wide)]
    skip = jnp.dot(ws_ref[...], ps_ref[...], preferred_element_type=jnp.float32)

    # residual fused in-kernel (no extra pallas_call / HBM pass).
    o_ref[0] = ((out + skip) * INV_SQRT2).astype(o_ref.dtype)


# ---------------------------------------------------------------------------
# pallas_call wrappers
# ---------------------------------------------------------------------------
def conv1_call(xflat, w1flat, b1, *, kh, kw, ci, co, pitch, wide):
    n, _, lin = xflat.shape
    kern = functools.partial(_conv1_kernel, kh=kh, kw=kw, ci=ci,
                             pitch=pitch, wide=wide)
    return pl.pallas_call(
        kern,
        out_shape=jax.ShapeDtypeStruct((n, co, wide), jnp.bfloat16),
        grid=(n,),
        in_specs=[
            pl.BlockSpec((1, ci, lin), lambda i: (i, 0, 0)),
            pl.BlockSpec((co, kh * kw * ci), lambda i: (0, 0)),
            pl.BlockSpec((co, 1), lambda i: (0, 0)),
        ],
        out_specs=pl.BlockSpec((1, co, wide), lambda i: (i, 0, 0)),
        scratch_shapes=[pltpu.VMEM((kh * kw * ci, wide), jnp.float32)],
        compiler_params=pltpu.CompilerParams(dimension_semantics=("parallel",)),
    )(xflat, w1flat, b1)


def down_call(h1ps_flat, xps_flat, w2flat, b2, wsflat, *, c4, co, pitch, wide):
    n, _, lh = h1ps_flat.shape
    lx = xps_flat.shape[2]
    kern = functools.partial(_down_kernel, c4=c4, pitch=pitch, wide=wide)
    return pl.pallas_call(
        kern,
        out_shape=jax.ShapeDtypeStruct((n, co, wide), jnp.float32),
        grid=(n,),
        in_specs=[
            pl.BlockSpec((1, c4, lh), lambda i: (i, 0, 0)),
            pl.BlockSpec((1, c4, lx), lambda i: (i, 0, 0)),
            pl.BlockSpec((co, 9 * c4), lambda i: (0, 0)),
            pl.BlockSpec((co, 1), lambda i: (0, 0)),
            pl.BlockSpec((co, 4 * c4), lambda i: (0, 0)),
        ],
        out_specs=pl.BlockSpec((1, co, wide), lambda i: (i, 0, 0)),
        scratch_shapes=[pltpu.VMEM((9 * c4, wide), jnp.float32),
                        pltpu.VMEM((4 * c4, wide), jnp.float32)],
        compiler_params=pltpu.CompilerParams(dimension_semantics=("parallel",)),
    )(h1ps_flat, xps_flat, w2flat, b2, wsflat)


# ---------------------------------------------------------------------------
# Setup helpers (plain JAX, tiny, done once per forward)
# ---------------------------------------------------------------------------
def make_blur_taps():
    k = jnp.array([1.0, 3.0, 3.0, 1.0], jnp.float32)
    k = k[None, :] * k[:, None]
    return k / jnp.sum(k)                                       # (4, 4), sum = 1


def _compose_blur_conv(w, taps):
    """Fold the depthwise 4x4 FIR (applied before the conv) into conv weights.
    w: (kh, kw, Ci, Co)  ->  (kh+3, kw+3, Ci, Co): W[u,v] = sum w[a,b]*taps[u-a,v-b]."""
    kh, kw, ci, co = w.shape
    out = jnp.zeros((kh + 3, kw + 3, ci, co), jnp.float32)
    for a in range(kh):
        for b in range(kw):
            out = out.at[a:a + 4, b:b + 4, :, :].add(
                taps[:, :, None, None] * w[a, b][None, None, :, :])
    return out


def _phase_split_weights(w):
    """(2S, 2M, Ci, Co) -> (S, M, 4*Ci, Co); new channel = (2r + t)*Ci + ci."""
    k1, k2, ci, co = w.shape
    s, m = k1 // 2, k2 // 2
    w = w.reshape(s, 2, m, 2, ci, co)        # [s, r, m, t, ci, co]
    w = w.transpose(0, 2, 1, 3, 4, 5)        # [s, m, r, t, ci, co]
    return w.reshape(s, m, 4 * ci, co)


def _flatten_weights(w):
    """(KH, KW, C, Co) -> (Co, KH*KW*C); column = (a*KW + b)*C + c."""
    kh, kw, c, co = w.shape
    return w.reshape(kh * kw * c, co).T


def _phase_split_act(x):
    """(N, C, H, W) (H, W even) -> (N, 4C, H/2, W/2); channel' = (2r + t)*C + c,
    value = x[n, c, 2i + r, 2j + t]  (space-to-depth, matches the weight split)."""
    n, c, h, w = x.shape
    x = x.reshape(n, c, h // 2, 2, w // 2, 2)       # [n, c, i, r, j, t]
    x = x.transpose(0, 3, 5, 1, 2, 4)               # [n, r, t, c, i, j]
    return x.reshape(n, 4 * c, h // 2, w // 2)


def _flatten_pitched(x, pitch, flat_len):
    """(N, C, H, W) -> (N, C, flat_len): each row padded to `pitch` columns,
    rows concatenated, tail zero-padded so in-kernel tap slices never go OOB."""
    n, c, h, w = x.shape
    x = jnp.pad(x, ((0, 0), (0, 0), (0, 0), (0, pitch - w)))
    x = x.reshape(n, c, h * pitch)
    return jnp.pad(x, ((0, 0), (0, 0), (0, flat_len - h * pitch)))


def init_params(key, in_channel, out_channel):
    """EqualConv2d weights: N(0,1) * 1/sqrt(fan_in) (scale baked in);
    FusedLeakyReLU biases are zeros, exactly as in the PyTorch __init__."""
    k1, k2, k3 = jax.random.split(key, 3)
    w1 = jax.random.normal(k1, (3, 3, in_channel, in_channel), jnp.float32) \
        * (1.0 / math.sqrt(in_channel * 9))
    w2 = jax.random.normal(k2, (3, 3, in_channel, out_channel), jnp.float32) \
        * (1.0 / math.sqrt(in_channel * 9))
    wskip = jax.random.normal(k3, (1, 1, in_channel, out_channel), jnp.float32) \
        * (1.0 / math.sqrt(in_channel * 1))
    b1 = jnp.zeros((in_channel,), jnp.float32)
    b2 = jnp.zeros((out_channel,), jnp.float32)
    return dict(w1=w1, b1=b1, w2=w2, b2=b2, wskip=wskip)


# ---------------------------------------------------------------------------
# ResBlock forward
# ---------------------------------------------------------------------------
def res_block_forward(x, params):
    """x: (N, Ci, H, W) float32 (NCHW). Returns (N, Co, H/2, W/2) float32."""
    x = x.astype(jnp.float32)
    n, ci, h, w = x.shape
    co = params["w2"].shape[-1]
    taps = make_blur_taps()

    # --- weight setup: fold blur into convs, phase-split stride-2 convs,
    #     flatten everything for the single-dot im2col kernels.
    w1f = _flatten_weights(params["w1"])                               # (Ci, 9Ci)
    w6 = _compose_blur_conv(params["w2"], taps)                        # (6,6,Ci,Co)
    w2f = _flatten_weights(_phase_split_weights(w6))                   # (Co, 36Ci)
    w4 = taps[:, :, None, None] * params["wskip"][0, 0][None, None]    # (4,4,Ci,Co)
    wsf = _flatten_weights(_phase_split_weights(w4))                   # (Co, 16Ci)
    b1 = params["b1"].reshape(ci, 1)
    b2 = params["b2"].reshape(co, 1)

    # --- call 1: conv1 (3x3 / s1 / p1) + FusedLeakyReLU ----------------------
    wp1 = w + 2                                   # zero-padded width
    pitch1 = _round_up(wp1, 8)                    # row pitch (lane-dense output)
    wide1 = h * pitch1                            # output col = y*pitch1 + x
    lin1 = _round_up(2 * pitch1 + 2 + wide1, 128)  # covers the last tap slice
    xflat = _flatten_pitched(jnp.pad(x, ((0, 0), (0, 0), (1, 1), (1, 1))),
                             pitch1, lin1)
    h1_wide = conv1_call(xflat, w1f, b1, kh=3, kw=3, ci=ci, co=ci,
                         pitch=pitch1, wide=wide1)          # (N, Ci, wide1) bf16
    h1 = h1_wide.reshape(n, ci, h, pitch1)[..., :w]          # (N, Ci, H, W) bf16

    # --- call 2: [blur+conv2+FLReLU] + [blur+skip] + residual ---------------
    ho, wo = h // 2, w // 2
    pitch2 = _round_up(wo + 2, 16)                # >= both padded phase widths
    wide2 = ho * pitch2                           # multiple of 128 -> dense vst
    # conv2 input: conv1 act padded by 2, phase-split -> (N, 4Ci, ho+2, wo+2)
    h1ps = _phase_split_act(jnp.pad(h1, ((0, 0), (0, 0), (2, 2), (2, 2))))
    lh = _round_up(2 * pitch2 + 2 + wide2, 128)
    h1ps_flat = _flatten_pitched(h1ps, pitch2, lh)
    # skip input: x padded by 1, phase-split -> (N, 4Ci, ho+1, wo+1)
    xps = _phase_split_act(jnp.pad(x, ((0, 0), (0, 0), (1, 1), (1, 1))))
    lx = _round_up(pitch2 + 1 + wide2, 128)
    xps_flat = _flatten_pitched(xps, pitch2, lx)

    y_wide = down_call(h1ps_flat, xps_flat, w2f, b2, wsf,
                       c4=4 * ci, co=co, pitch=pitch2, wide=wide2)
    # Wide layout -> NCHW is a free reshape + slice (no transpose).
    return y_wide.reshape(n, co, ho, pitch2)[..., :wo]


# ---------------------------------------------------------------------------
# Pure-JAX reference of the original (unfused) pipeline, for validation
# ---------------------------------------------------------------------------
def _reference_forward(x, params):
    taps = make_blur_taps()

    def conv(x, w, stride, padding):
        w = jnp.transpose(w, (3, 2, 0, 1))                    # HWIO -> OIHW
        return jax.lax.conv_general_dilated(
            x, w, window_strides=(stride, stride),
            padding=((padding, padding), (padding, padding)),
            dimension_numbers=("NCHW", "OIHW", "NCHW"))

    def blur(x, pad):
        c = x.shape[1]
        k = jnp.broadcast_to(taps, (c, 1, 4, 4))
        return jax.lax.conv_general_dilated(
            x, k, window_strides=(1, 1),
            padding=((pad[0], pad[1]), (pad[0], pad[1])),
            dimension_numbers=("NCHW", "OIHW", "NCHW"),
            feature_group_count=c)

    def flrelu(x, b):
        x = x + b.reshape(1, -1, 1, 1)
        return jnp.where(x >= 0.0, x, 0.2 * x) * SQRT2

    out = flrelu(conv(x, params["w1"], 1, 1), params["b1"])
    out = flrelu(conv(blur(out, (2, 2)), params["w2"], 2, 0), params["b2"])
    skip = conv(blur(x, (1, 1)), params["wskip"], 2, 0)
    return (out + skip) * INV_SQRT2


if __name__ == "__main__":
    key = jax.random.PRNGKey(0)
    kx, kp = jax.random.split(key)

    N, C_IN, C_OUT, H, W = 2, 4, 8, 16, 16
    x = jax.random.normal(kx, (N, C_IN, H, W), jnp.float32)     # NCHW like PyTorch
    params = init_params(kp, C_IN, C_OUT)

    fwd = jax.jit(functools.partial(res_block_forward, params=params))
    y = jax.block_until_ready(fwd(x))

    assert y.shape == (N, C_OUT, H // 2, W // 2), y.shape
    assert bool(jnp.all(jnp.isfinite(y)))

    # Validate against the unfused reference (loose tolerance: the conv1
    # activation is stored in bf16 between the two pallas_calls).
    y_ref = _reference_forward(x, params)
    assert bool(jnp.allclose(y, y_ref, atol=1e-1, rtol=1e-1)), \
        float(jnp.max(jnp.abs(y - y_ref)))

    print("KERNEL_OK")
</pallas_src>

<mosaic_0001>
module attributes {stable_mosaic.version = 11 : i64} {
  func.func @_conv1_kernel(%arg0: i32, %arg1: memref<1x4x512xf32, #tpu.memory_space<vmem>>, %arg2: memref<4x36xf32, #tpu.memory_space<vmem>>, %arg3: memref<4x1xf32, #tpu.memory_space<vmem>>, %arg4: memref<1x4x384xbf16, #tpu.memory_space<vmem>>, %arg5: memref<36x384xf32, #tpu.memory_space<vmem>>) attributes {dimension_semantics = [#tpu.dimension_semantics<parallel>], iteration_bounds = array<i64: 2>, scalar_prefetch = 0 : i64, scratch_operands = 1 : i64, tpu.core_type = #tpu.core_type<tc>, window_params = [{transform_indices = @transform_0, window_bounds = array<i64: 1, 4, 512>}, {pipeline_mode = #tpu.pipeline_mode<synchronous>, transform_indices = @transform_1, window_bounds = array<i64: 4, 36>}, {pipeline_mode = #tpu.pipeline_mode<synchronous>, transform_indices = @transform_2, window_bounds = array<i64: 4, 1>}, {transform_indices = @transform_3, window_bounds = array<i64: 1, 4, 384>}]} {
    %c0 = arith.constant 0 : index
    %c0_0 = arith.constant 0 : index
    %c0_1 = arith.constant 0 : index
    %0 = vector.load %arg1[%c0, %c0_0, %c0_1] : memref<1x4x512xf32, #tpu.memory_space<vmem>>, vector<1x4x384xf32>
    %1 = vector.shape_cast %0 : vector<1x4x384xf32> to vector<4x384xf32>
    %c0_2 = arith.constant 0 : index
    %c0_3 = arith.constant 0 : index
    %2 = vector.load %arg5[%c0_2, %c0_3] : memref<36x384xf32, #tpu.memory_space<vmem>>, vector<4x384xf32>
    tpu.vector_store %arg5[%c0_2, %c0_3], %1 {strides = array<i32>} : memref<36x384xf32, #tpu.memory_space<vmem>>, vector<4x384xf32>,
    %c0_4 = arith.constant 0 : index
    %c0_5 = arith.constant 0 : index
    %c1 = arith.constant 1 : index
    %3 = vector.load %arg1[%c0_4, %c0_5, %c1] : memref<1x4x512xf32, #tpu.memory_space<vmem>>, vector<1x4x384xf32>
    %4 = vector.shape_cast %3 : vector<1x4x384xf32> to vector<4x384xf32>
    %c4 = arith.constant 4 : index
    %c0_6 = arith.constant 0 : index
    %5 = vector.load %arg5[%c4, %c0_6] : memref<36x384xf32, #tpu.memory_space<vmem>>, vector<4x384xf32>
    tpu.vector_store %arg5[%c4, %c0_6], %4 {strides = array<i32>} : memref<36x384xf32, #tpu.memory_space<vmem>>, vector<4x384xf32>,
    %c0_7 = arith.constant 0 : index
    %c0_8 = arith.constant 0 : index
    %c2 = arith.constant 2 : index
    %6 = vector.load %arg1[%c0_7, %c0_8, %c2] : memref<1x4x512xf32, #tpu.memory_space<vmem>>, vector<1x4x384xf32>
    %7 = vector.shape_cast %6 : vector<1x4x384xf32> to vector<4x384xf32>
    %c8 = arith.constant 8 : index
    %c0_9 = arith.constant 0 : index
    %8 = vector.load %arg5[%c8, %c0_9] : memref<36x384xf32, #tpu.memory_space<vmem>>, vector<4x384xf32>
    tpu.vector_store %arg5[%c8, %c0_9], %7 {strides = array<i32>} : memref<36x384xf32, #tpu.memory_space<vmem>>, vector<4x384xf32>,
    %c0_10 = arith.constant 0 : index
    %c0_11 = arith.constant 0 : index
    %c24 = arith.constant 24 : index
    %9 = vector.load %arg1[%c0_10, %c0_11, %c24] : memref<1x4x512xf32, #tpu.memory_space<vmem>>, vector<1x4x384xf32>
    %10 = vector.shape_cast %9 : vector<1x4x384xf32> to vector<4x384xf32>
    %c12 = arith.constant 12 : index
    %c0_12 = arith.constant 0 : index
    %11 = vector.load %arg5[%c12, %c0_12] : memref<36x384xf32, #tpu.memory_space<vmem>>, vector<4x384xf32>
    tpu.vector_store %arg5[%c12, %c0_12], %10 {strides = array<i32>} : memref<36x384xf32, #tpu.memory_space<vmem>>, vector<4x384xf32>,
    %c0_13 = arith.constant 0 : index
    %c0_14 = arith.constant 0 : index
    %c25 = arith.constant 25 : index
    %12 = vector.load %arg1[%c0_13, %c0_14, %c25] : memref<1x4x512xf32, #tpu.memory_space<vmem>>, vector<1x4x384xf32>
    %13 = vector.shape_cast %12 : vector<1x4x384xf32> to vector<4x384xf32>
    %c16 = arith.constant 16 : index
    %c0_15 = arith.constant 0 : index
    %14 = vector.load %arg5[%c16, %c0_15] : memref<36x384xf32, #tpu.memory_space<vmem>>, vector<4x384xf32>
    tpu.vector_store %arg5[%c16, %c0_15], %13 {strides = array<i32>} : memref<36x384xf32, #tpu.memory_space<vmem>>, vector<4x384xf32>,
    %c0_16 = arith.constant 0 : index
    %c0_17 = arith.constant 0 : index
    %c26 = arith.constant 26 : index
    %15 = vector.load %arg1[%c0_16, %c0_17, %c26] : memref<1x4x512xf32, #tpu.memory_space<vmem>>, vector<1x4x384xf32>
    %16 = vector.shape_cast %15 : vector<1x4x384xf32> to vector<4x384xf32>
    %c20 = arith.constant 20 : index
    %c0_18 = arith.constant 0 : index
    %17 = vector.load %arg5[%c20, %c0_18] : memref<36x384xf32, #tpu.memory_space<vmem>>, vector<4x384xf32>
    tpu.vector_store %arg5[%c20, %c0_18], %16 {strides = array<i32>} : memref<36x384xf32, #tpu.memory_space<vmem>>, vector<4x384xf32>,
    %c0_19 = arith.constant 0 : index
    %c0_20 = arith.constant 0 : index
    %c48 = arith.constant 48 : index
    %18 = vector.load %arg1[%c0_19, %c0_20, %c48] : memref<1x4x512xf32, #tpu.memory_space<vmem>>, vector<1x4x384xf32>
    %19 = vector.shape_cast %18 : vector<1x4x384xf32> to vector<4x384xf32>
    %c24_21 = arith.constant 24 : index
    %c0_22 = arith.constant 0 : index
    %20 = vector.load %arg5[%c24_21, %c0_22] : memref<36x384xf32, #tpu.memory_space<vmem>>, vector<4x384xf32>
    tpu.vector_store %arg5[%c24_21, %c0_22], %19 {strides = array<i32>} : memref<36x384xf32, #tpu.memory_space<vmem>>, vector<4x384xf32>,
    %c0_23 = arith.constant 0 : index
    %c0_24 = arith.constant 0 : index
    %c49 = arith.constant 49 : index
    %21 = vector.load %arg1[%c0_23, %c0_24, %c49] : memref<1x4x512xf32, #tpu.memory_space<vmem>>, vector<1x4x384xf32>
    %22 = vector.shape_cast %21 : vector<1x4x384xf32> to vector<4x384xf32>
    %c28 = arith.constant 28 : index
    %c0_25 = arith.constant 0 : index
    %23 = vector.load %arg5[%c28, %c0_25] : memref<36x384xf32, #tpu.memory_space<vmem>>, vector<4x384xf32>
    tpu.vector_store %arg5[%c28, %c0_25], %22 {strides = array<i32>} : memref<36x384xf32, #tpu.memory_space<vmem>>, vector<4x384xf32>,
    %c0_26 = arith.constant 0 : index
    %c0_27 = arith.constant 0 : index
    %c50 = arith.constant 50 : index
    %24 = vector.load %arg1[%c0_26, %c0_27, %c50] : memref<1x4x512xf32, #tpu.memory_space<vmem>>, vector<1x4x384xf32>
    %25 = vector.shape_cast %24 : vector<1x4x384xf32> to vector<4x384xf32>
    %c32 = arith.constant 32 : index
    %c0_28 = arith.constant 0 : index
    %26 = vector.load %arg5[%c32, %c0_28] : memref<36x384xf32, #tpu.memory_space<vmem>>, vector<4x384xf32>
    tpu.vector_store %arg5[%c32, %c0_28], %25 {strides = array<i32>} : memref<36x384xf32, #tpu.memory_space<vmem>>, vector<4x384xf32>,
    %c0_29 = arith.constant 0 : index
    %c0_30 = arith.constant 0 : index
    %27 = vector.load %arg2[%c0_29, %c0_30] : memref<4x36xf32, #tpu.memory_space<vmem>>, vector<4x36xf32>
    %c0_31 = arith.constant 0 : index
    %c0_32 = arith.constant 0 : index
    %28 = vector.load %arg5[%c0_31, %c0_32] : memref<36x384xf32, #tpu.memory_space<vmem>>, vector<36x384xf32>
    %cst = arith.constant dense<0.000000e+00> : vector<4x384xf32>
    %29 = tpu.matmul %27, %28, %cst {dimension_numbers = #tpu.dot_dimension_numbers<[1], [0], [0], [1], [0, 0, 1, 1], [], []>} : vector<4x36xf32>, vector<36x384xf32>, vector<4x384xf32> -> vector<4x384xf32>
    %c0_33 = arith.constant 0 : index
    %c0_34 = arith.constant 0 : index
    %30 = vector.load %arg3[%c0_33, %c0_34] : memref<4x1xf32, #tpu.memory_space<vmem>>, vector<4x1xf32>
    %31 = vector.broadcast %30 : vector<4x1xf32> to vector<4x384xf32>
    %32 = arith.addf %29, %31 : vector<4x384xf32>
    %cst_35 = arith.constant 0.000000e+00 : f32
    %33 = vector.broadcast %cst_35 : f32 to vector<4x384xf32>
    %34 = arith.cmpf oge, %32, %33 : vector<4x384xf32>
    %cst_36 = arith.constant 2.000000e-01 : f32
    %35 = vector.broadcast %cst_36 : f32 to vector<4x384xf32>
    %36 = arith.mulf %35, %32 : vector<4x384xf32>
    %37 = arith.select %34, %32, %36 : vector<4x384xi1>, vector<4x384xf32>
    %cst_37 = arith.constant 1.41421354 : f32
    %38 = vector.broadcast %cst_37 : f32 to vector<4x384xf32>
    %39 = arith.mulf %37, %38 : vector<4x384xf32>
    %40 = arith.truncf %39 : vector<4x384xf32> to vector<4x384xbf16>
    %c0_38 = arith.constant 0 : index
    %c0_39 = arith.constant 0 : index
    %c0_40 = arith.constant 0 : index
    %41 = vector.load %arg4[%c0_38, %c0_39, %c0_40] : memref<1x4x384xbf16, #tpu.memory_space<vmem>>, vector<1x4x384xbf16>
    %42 = vector.shape_cast %41 : vector<1x4x384xbf16> to vector<4x384xbf16>
    %43 = vector.shape_cast %40 : vector<4x384xbf16> to vector<1x4x384xbf16>
    tpu.vector_store %arg4[%c0_38, %c0_39, %c0_40], %43 {strides = array<i32>} : memref<1x4x384xbf16, #tpu.memory_space<vmem>>, vector<1x4x384xbf16>,
    return
  }
  func.func @transform_0(%arg0: i32) -> (i32, i32, i32) {
    %c0_i32 = arith.constant 0 : i32
    %c0_i32_0 = arith.constant 0 : i32
    %c0_i32_1 = arith.constant 0 : i32
    return %arg0, %c0_i32, %c0_i32_0 : i32, i32, i32
  }
  func.func @transform_1(%arg0: i32) -> (i32, i32) {
    %c0_i32 = arith.constant 0 : i32
    %c0_i32_0 = arith.constant 0 : i32
    %c0_i32_1 = arith.constant 0 : i32
    return %c0_i32, %c0_i32_0 : i32, i32
  }
  func.func @transform_2(%arg0: i32) -> (i32, i32) {
    %c0_i32 = arith.constant 0 : i32
    %c0_i32_0 = arith.constant 0 : i32
    %c0_i32_1 = arith.constant 0 : i32
    return %c0_i32, %c0_i32_0 : i32, i32
  }
  func.func @transform_3(%arg0: i32) -> (i32, i32, i32) {
    %c0_i32 = arith.constant 0 : i32
    %c0_i32_0 = arith.constant 0 : i32
    %c0_i32_1 = arith.constant 0 : i32
    return %arg0, %c0_i32, %c0_i32_0 : i32, i32, i32
  }
}

module attributes {stable_mosaic.version = 11 : i64} {
  func.func @_down_kernel(%arg0: i32, %arg1: memref<1x16x256xbf16, #tpu.memory_space<vmem>>, %arg2: memref<1x16x256xf32, #tpu.memory_space<vmem>>, %arg3: memref<8x144xf32, #tpu.memory_space<vmem>>, %arg4: memref<8x1xf32, #tpu.memory_space<vmem>>, %arg5: memref<8x64xf32, #tpu.memory_space<vmem>>, %arg6: memref<1x8x128xf32, #tpu.memory_space<vmem>>, %arg7: memref<144x128xf32, #tpu.memory_space<vmem>>, %arg8: memref<64x128xf32, #tpu.memory_space<vmem>>) attributes {dimension_semantics = [#tpu.dimension_semantics<parallel>], iteration_bounds = array<i64: 2>, scalar_prefetch = 0 : i64, scratch_operands = 2 : i64, tpu.core_type = #tpu.core_type<tc>, window_params = [{transform_indices = @transform_0, window_bounds = array<i64: 1, 16, 256>}, {transform_indices = @transform_1, window_bounds = array<i64: 1, 16, 256>}, {pipeline_mode = #tpu.pipeline_mode<synchronous>, transform_indices = @transform_2, window_bounds = array<i64: 8, 144>}, {pipeline_mode = #tpu.pipeline_mode<synchronous>, transform_indices = @transform_3, window_bounds = array<i64: 8, 1>}, {pipeline_mode = #tpu.pipeline_mode<synchronous>, transform_indices = @transform_4, window_bounds = array<i64: 8, 64>}, {transform_indices = @transform_5, window_bounds = array<i64: 1, 8, 128>}]} {
    %c0 = arith.constant 0 : index
    %c0_0 = arith.constant 0 : index
    %c0_1 = arith.constant 0 : index
    %0 = vector.load %arg1[%c0, %c0_0, %c0_1] : memref<1x16x256xbf16, #tpu.memory_space<vmem>>, vector<1x16x128xbf16>
    %1 = vector.shape_cast %0 : vector<1x16x128xbf16> to vector<16x128xbf16>
    %2 = arith.extf %1 : vector<16x128xbf16> to vector<16x128xf32>
    %c0_2 = arith.constant 0 : index
    %c0_3 = arith.constant 0 : index
    %3 = vector.load %arg7[%c0_2, %c0_3] : memref<144x128xf32, #tpu.memory_space<vmem>>, vector<16x128xf32>
    tpu.vector_store %arg7[%c0_2, %c0_3], %2 {strides = array<i32>} : memref<144x128xf32, #tpu.memory_space<vmem>>, vector<16x128xf32>,
    %c0_4 = arith.constant 0 : index
    %c0_5 = arith.constant 0 : index
    %c1 = arith.constant 1 : index
    %4 = vector.load %arg1[%c0_4, %c0_5, %c1] : memref<1x16x256xbf16, #tpu.memory_space<vmem>>, vector<1x16x128xbf16>
    %5 = vector.shape_cast %4 : vector<1x16x128xbf16> to vector<16x128xbf16>
    %6 = arith.extf %5 : vector<16x128xbf16> to vector<16x128xf32>
    %c16 = arith.constant 16 : index
    %c0_6 = arith.constant 0 : index
    %7 = vector.load %arg7[%c16, %c0_6] : memref<144x128xf32, #tpu.memory_space<vmem>>, vector<16x128xf32>
    tpu.vector_store %arg7[%c16, %c0_6], %6 {strides = array<i32>} : memref<144x128xf32, #tpu.memory_space<vmem>>, vector<16x128xf32>,
    %c0_7 = arith.constant 0 : index
    %c0_8 = arith.constant 0 : index
    %c2 = arith.constant 2 : index
    %8 = vector.load %arg1[%c0_7, %c0_8, %c2] : memref<1x16x256xbf16, #tpu.memory_space<vmem>>, vector<1x16x128xbf16>
    %9 = vector.shape_cast %8 : vector<1x16x128xbf16> to vector<16x128xbf16>
    %10 = arith.extf %9 : vector<16x128xbf16> to vector<16x128xf32>
    %c32 = arith.constant 32 : index
    %c0_9 = arith.constant 0 : index
    %11 = vector.load %arg7[%c32, %c0_9] : memref<144x128xf32, #tpu.memory_space<vmem>>, vector<16x128xf32>
    tpu.vector_store %arg7[%c32, %c0_9], %10 {strides = array<i32>} : memref<144x128xf32, #tpu.memory_space<vmem>>, vector<16x128xf32>,
    %c0_10 = arith.constant 0 : index
    %c0_11 = arith.constant 0 : index
    %c16_12 = arith.constant 16 : index
    %12 = vector.load %arg1[%c0_10, %c0_11, %c16_12] : memref<1x16x256xbf16, #tpu.memory_space<vmem>>, vector<1x16x128xbf16>
    %13 = vector.shape_cast %12 : vector<1x16x128xbf16> to vector<16x128xbf16>
    %14 = arith.extf %13 : vector<16x128xbf16> to vector<16x128xf32>
    %c48 = arith.constant 48 : index
    %c0_13 = arith.constant 0 : index
    %15 = vector.load %arg7[%c48, %c0_13] : memref<144x128xf32, #tpu.memory_space<vmem>>, vector<16x128xf32>
    tpu.vector_store %arg7[%c48, %c0_13], %14 {strides = array<i32>} : memref<144x128xf32, #tpu.memory_space<vmem>>, vector<16x128xf32>,
    %c0_14 = arith.constant 0 : index
    %c0_15 = arith.constant 0 : index
    %c17 = arith.constant 17 : index
    %16 = vector.load %arg1[%c0_14, %c0_15, %c17] : memref<1x16x256xbf16, #tpu.memory_space<vmem>>, vector<1x16x128xbf16>
    %17 = vector.shape_cast %16 : vector<1x16x128xbf16> to vector<16x128xbf16>
    %18 = arith.extf %17 : vector<16x128xbf16> to vector<16x128xf32>
    %c64 = arith.constant 64 : index
    %c0_16 = arith.constant 0 : index
    %19 = vector.load %arg7[%c64, %c0_16] : memref<144x128xf32, #tpu.memory_space<vmem>>, vector<16x128xf32>
    tpu.vector_store %arg7[%c64, %c0_16], %18 {strides = array<i32>} : memref<144x128xf32, #tpu.memory_space<vmem>>, vector<16x128xf32>,
    %c0_17 = arith.constant 0 : index
    %c0_18 = arith.constant 0 : index
    %c18 = arith.constant 18 : index
    %20 = vector.load %arg1[%c0_17, %c0_18, %c18] : memref<1x16x256xbf16, #tpu.memory_space<vmem>>, vector<1x16x128xbf16>
    %21 = vector.shape_cast %20 : vector<1x16x128xbf16> to vector<16x128xbf16>
    %22 = arith.extf %21 : vector<16x128xbf16> to vector<16x128xf32>
    %c80 = arith.constant 80 : index
    %c0_19 = arith.constant 0 : index
    %23 = vector.load %arg7[%c80, %c0_19] : memref<144x128xf32, #tpu.memory_space<vmem>>, vector<16x128xf32>
    tpu.vector_store %arg7[%c80, %c0_19], %22 {strides = array<i32>} : memref<144x128xf32, #tpu.memory_space<vmem>>, vector<16x128xf32>,
    %c0_20 = arith.constant 0 : index
    %c0_21 = arith.constant 0 : index
    %c32_22 = arith.constant 32 : index
    %24 = vector.load %arg1[%c0_20, %c0_21, %c32_22] : memref<1x16x256xbf16, #tpu.memory_space<vmem>>, vector<1x16x128xbf16>
    %25 = vector.shape_cast %24 : vector<1x16x128xbf16> to vector<16x128xbf16>
    %26 = arith.extf %25 : vector<16x128xbf16> to vector<16x128xf32>
    %c96 = arith.constant 96 : index
    %c0_23 = arith.constant 0 : index
    %27 = vector.load %arg7[%c96, %c0_23] : memref<144x128xf32, #tpu.memory_space<vmem>>, vector<16x128xf32>
    tpu.vector_store %arg7[%c96, %c0_23], %26 {strides = array<i32>} : memref<144x128xf32, #tpu.memory_space<vmem>>, vector<16x128xf32>,
    %c0_24 = arith.constant 0 : index
    %c0_25 = arith.constant 0 : index
    %c33 = arith.constant 33 : index
    %28 = vector.load %arg1[%c0_24, %c0_25, %c33] : memref<1x16x256xbf16, #tpu.memory_space<vmem>>, vector<1x16x128xbf16>
    %29 = vector.shape_cast %28 : vector<1x16x128xbf16> to vector<16x128xbf16>
    %30 = arith.extf %29 : vector<16x128xbf16> to vector<16x128xf32>
    %c112 = arith.constant 112 : index
    %c0_26 = arith.constant 0 : index
    %31 = vector.load %arg7[%c112, %c0_26] : memref<144x128xf32, #tpu.memory_space<vmem>>, vector<16x128xf32>
    tpu.vector_store %arg7[%c112, %c0_26], %30 {strides = array<i32>} : memref<144x128xf32, #tpu.memory_space<vmem>>, vector<16x128xf32>,
    %c0_27 = arith.constant 0 : index
    %c0_28 = arith.constant 0 : index
    %c34 = arith.constant 34 : index
    %32 = vector.load %arg1[%c0_27, %c0_28, %c34] : memref<1x16x256xbf16, #tpu.memory_space<vmem>>, vector<1x16x128xbf16>
    %33 = vector.shape_cast %32 : vector<1x16x128xbf16> to vector<16x128xbf16>
    %34 = arith.extf %33 : vector<16x128xbf16> to vector<16x128xf32>
    %c128 = arith.constant 128 : index
    %c0_29 = arith.constant 0 : index
    %35 = vector.load %arg7[%c128, %c0_29] : memref<144x128xf32, #tpu.memory_space<vmem>>, vector<16x128xf32>
    tpu.vector_store %arg7[%c128, %c0_29], %34 {strides = array<i32>} : memref<144x128xf32, #tpu.memory_space<vmem>>, vector<16x128xf32>,
    %c0_30 = arith.constant 0 : index
    %c0_31 = arith.constant 0 : index
    %36 = vector.load %arg3[%c0_30, %c0_31] : memref<8x144xf32, #tpu.memory_space<vmem>>, vector<8x144xf32>
    %c0_32 = arith.constant 0 : index
    %c0_33 = arith.constant 0 : index
    %37 = vector.load %arg7[%c0_32, %c0_33] : memref<144x128xf32, #tpu.memory_space<vmem>>, vector<144x128xf32>
    %cst = arith.constant dense<0.000000e+00> : vector<8x128xf32>
    %38 = tpu.matmul %36, %37, %cst {dimension_numbers = #tpu.dot_dimension_numbers<[1], [0], [0], [1], [0, 0, 1, 1], [], []>} : vector<8x144xf32>, vector<144x128xf32>, vector<8x128xf32> -> vector<8x128xf32>
    %c0_34 = arith.constant 0 : index
    %c0_35 = arith.constant 0 : index
    %39 = vector.load %arg4[%c0_34, %c0_35] : memref<8x1xf32, #tpu.memory_space<vmem>>, vector<8x1xf32>
    %40 = vector.broadcast %39 : vector<8x1xf32> to vector<8x128xf32>
    %41 = arith.addf %38, %40 : vector<8x128xf32>
    %cst_36 = arith.constant 0.000000e+00 : f32
    %42 = vector.broadcast %cst_36 : f32 to vector<8x128xf32>
    %43 = arith.cmpf oge, %41, %42 : vector<8x128xf32>
    %cst_37 = arith.constant 2.000000e-01 : f32
    %44 = vector.broadcast %cst_37 : f32 to vector<8x128xf32>
    %45 = arith.mulf %44, %41 : vector<8x128xf32>
    %46 = arith.select %43, %41, %45 : vector<8x128xi1>, vector<8x128xf32>
    %cst_38 = arith.constant 1.41421354 : f32
    %47 = vector.broadcast %cst_38 : f32 to vector<8x128xf32>
    %48 = arith.mulf %46, %47 : vector<8x128xf32>
    %c0_39 = arith.constant 0 : index
    %c0_40 = arith.constant 0 : index
    %c0_41 = arith.constant 0 : index
    %49 = vector.load %arg2[%c0_39, %c0_40, %c0_41] : memref<1x16x256xf32, #tpu.memory_space<vmem>>, vector<1x16x128xf32>
    %50 = vector.shape_cast %49 : vector<1x16x128xf32> to vector<16x128xf32>
    %c0_42 = arith.constant 0 : index
    %c0_43 = arith.constant 0 : index
    %51 = vector.load %arg8[%c0_42, %c0_43] : memref<64x128xf32, #tpu.memory_space<vmem>>, vector<16x128xf32>
    tpu.vector_store %arg8[%c0_42, %c0_43], %50 {strides = array<i32>} : memref<64x128xf32, #tpu.memory_space<vmem>>, vector<16x128xf32>,
    %c0_44 = arith.constant 0 : index
    %c0_45 = arith.constant 0 : index
    %c1_46 = arith.constant 1 : index
    %52 = vector.load %arg2[%c0_44, %c0_45, %c1_46] : memref<1x16x256xf32, #tpu.memory_space<vmem>>, vector<1x16x128xf32>
    %53 = vector.shape_cast %52 : vector<1x16x128xf32> to vector<16x128xf32>
    %c16_47 = arith.constant 16 : index
    %c0_48 = arith.constant 0 : index
    %54 = vector.load %arg8[%c16_47, %c0_48] : memref<64x128xf32, #tpu.memory_space<vmem>>, vector<16x128xf32>
    tpu.vector_store %arg8[%c16_47, %c0_48], %53 {strides = array<i32>} : memref<64x128xf32, #tpu.memory_space<vmem>>, vector<16x128xf32>,
    %c0_49 = arith.constant 0 : index
    %c0_50 = arith.constant 0 : index
    %c16_51 = arith.constant 16 : index
    %55 = vector.load %arg2[%c0_49, %c0_50, %c16_51] : memref<1x16x256xf32, #tpu.memory_space<vmem>>, vector<1x16x128xf32>
    %56 = vector.shape_cast %55 : vector<1x16x128xf32> to vector<16x128xf32>
    %c32_52 = arith.constant 32 : index
    %c0_53 = arith.constant 0 : index
    %57 = vector.load %arg8[%c32_52, %c0_53] : memref<64x128xf32, #tpu.memory_space<vmem>>, vector<16x128xf32>
    tpu.vector_store %arg8[%c32_52, %c0_53], %56 {strides = array<i32>} : memref<64x128xf32, #tpu.memory_space<vmem>>, vector<16x128xf32>,
    %c0_54 = arith.constant 0 : index
    %c0_55 = arith.constant 0 : index
    %c17_56 = arith.constant 17 : index
    %58 = vector.load %arg2[%c0_54, %c0_55, %c17_56] : memref<1x16x256xf32, #tpu.memory_space<vmem>>, vector<1x16x128xf32>
    %59 = vector.shape_cast %58 : vector<1x16x128xf32> to vector<16x128xf32>
    %c48_57 = arith.constant 48 : index
    %c0_58 = arith.constant 0 : index
    %60 = vector.load %arg8[%c48_57, %c0_58] : memref<64x128xf32, #tpu.memory_space<vmem>>, vector<16x128xf32>
    tpu.vector_store %arg8[%c48_57, %c0_58], %59 {strides = array<i32>} : memref<64x128xf32, #tpu.memory_space<vmem>>, vector<16x128xf32>,
    %c0_59 = arith.constant 0 : index
    %c0_60 = arith.constant 0 : index
    %61 = vector.load %arg5[%c0_59, %c0_60] : memref<8x64xf32, #tpu.memory_space<vmem>>, vector<8x64xf32>
    %c0_61 = arith.constant 0 : index
    %c0_62 = arith.constant 0 : index
    %62 = vector.load %arg8[%c0_61, %c0_62] : memref<64x128xf32, #tpu.memory_space<vmem>>, vector<64x128xf32>
    %cst_63 = arith.constant dense<0.000000e+00> : vector<8x128xf32>
    %63 = tpu.matmul %61, %62, %cst_63 {dimension_numbers = #tpu.dot_dimension_numbers<[1], [0], [0], [1], [0, 0, 1, 1], [], []>} : vector<8x64xf32>, vector<64x128xf32>, vector<8x128xf32> -> vector<8x128xf32>
    %64 = arith.addf %48, %63 : vector<8x128xf32>
    %cst_64 = arith.constant 0.707106769 : f32
    %65 = vector.broadcast %cst_64 : f32 to vector<8x128xf32>
    %66 = arith.mulf %64, %65 : vector<8x128xf32>
    %c0_65 = arith.constant 0 : index
    %c0_66 = arith.constant 0 : index
    %c0_67 = arith.constant 0 : index
    %67 = vector.load %arg6[%c0_65, %c0_66, %c0_67] : memref<1x8x128xf32, #tpu.memory_space<vmem>>, vector<1x8x128xf32>
    %68 = vector.shape_cast %67 : vector<1x8x128xf32> to vector<8x128xf32>
    %69 = vector.shape_cast %66 : vector<8x128xf32> to vector<1x8x128xf32>
    tpu.vector_store %arg6[%c0_65, %c0_66, %c0_67], %69 {strides = array<i32>} : memref<1x8x128xf32, #tpu.memory_space<vmem>>, vector<1x8x128xf32>,
    return
  }
  func.func @transform_0(%arg0: i32) -> (i32, i32, i32) {
    %c0_i32 = arith.constant 0 : i32
    %c0_i32_0 = arith.constant 0 : i32
    %c0_i32_1 = arith.constant 0 : i32
    return %arg0, %c0_i32, %c0_i32_0 : i32, i32, i32
  }
  func.func @transform_1(%arg0: i32) -> (i32, i32, i32) {
    %c0_i32 = arith.constant 0 : i32
    %c0_i32_0 = arith.constant 0 : i32
    %c0_i32_1 = arith.constant 0 : i32
    return %arg0, %c0_i32, %c0_i32_0 : i32, i32, i32
  }
  func.func @transform_2(%arg0: i32) -> (i32, i32) {
    %c0_i32 = arith.constant 0 : i32
    %c0_i32_0 = arith.constant 0 : i32
    %c0_i32_1 = arith.constant 0 : i32
    return %c0_i32, %c0_i32_0 : i32, i32
  }
  func.func @transform_3(%arg0: i32) -> (i32, i32) {
    %c0_i32 = arith.constant 0 : i32
    %c0_i32_0 = arith.constant 0 : i32
    %c0_i32_1 = arith.constant 0 : i32
    return %c0_i32, %c0_i32_0 : i32, i32
  }
  func.func @transform_4(%arg0: i32) -> (i32, i32) {
    %c0_i32 = arith.constant 0 : i32
    %c0_i32_0 = arith.constant 0 : i32
    %c0_i32_1 = arith.constant 0 : i32
    return %c0_i32, %c0_i32_0 : i32, i32
  }
  func.func @transform_5(%arg0: i32) -> (i32, i32, i32) {
    %c0_i32 = arith.constant 0 : i32
    %c0_i32_0 = arith.constant 0 : i32
    %c0_i32_1 = arith.constant 0 : i32
    return %arg0, %c0_i32, %c0_i32_0 : i32, i32, i32
  }
}

</mosaic_0001>

<llo_original>
// kernel: res_block_forward.2
$region0: #{res_block_forward.2}
  #allocation0 [shape = 'u32[]', space=smem, size = 0x4, offset = 0x4, fixed_abs, tag = 'smem constant byte address 0x4 - core index']
  #allocation1 [shape = 'u32[144,128]{1,0:T(1,128)}', space=vmem, size = 0x12000, scoped, tag = 'internal scratch']
  #allocation2 [shape = 'f32[36,384]{1,0:T(8,128)}', space=vmem, size = 0xf000, scoped, tag = 'scratch operand']
  %s0 = inlined_call_operand.vmem [shape: f32[2,4,512], index: 0, kind: input, shape index: {}]
  %s1 = inlined_call_operand.vmem [shape: f32[4,36], index: 1, kind: input, shape index: {}]
  %s2 = inlined_call_operand.vmem [shape: f32[4,1], index: 2, kind: input, shape index: {}]
  %s3 = inlined_call_operand.vmem [shape: bf16[2,4,384], index: 3, kind: output, shape index: {}]
  %s4 = sld [smem:[#allocation0]]
  $region45: #{res_block_forward.2} parent=0
    _
  %s6 = ssub.s32 1, %s4
  %s7 = scalar_select 0, %s6, %s4
  loop: start=0, step=1, limit=4
  $region2: #{res_block_forward.2} parent=0 // loop_pre_header
    _
  $region3: #{res_block_forward.2} parent=0 // loop_header
    %s9 = sphi 0, %s13
    %p10 = scmp.ge.s32.totalorder %s9, 4
    %s19 = sphi 0, %s21
    %s22 = sphi 0, %s19
    %s23 = sphi 0, %s22
    %s39 = sphi 0, %s23
    %s43 = sphi 0, %s43
    %s45 = sphi 0, %s43
    %s46 = sphi 0, %s45
    %s60 = sphi 0, %s46
    %s64 = sphi 0, %s64
    %s66 = sphi 0, %s64
    %s67 = sphi 0, %s66
    %s81 = sphi 0, %s67
    %s87 = sphi 0, %s89
    %s90 = sphi 0, %s87
    %s91 = sphi 0, %s90
    %s107 = sphi 0, %s91
  $region4: #{res_block_forward.2} parent=0 // loop_header_branch
    %12 = sbr.rel (%p10) target = $region8
  $region5: #{res_block_forward.2} parent=0 // loop_body
    %s14 = ssub.s32 %s9, 1
    %s15 = ssub.s32 %s9, 2
    %s16 = sadd.s32 %s9, 1
    %s17 = ssub.s32 %s9, %s16
    %p18 = scmp.eq.s32.totalorder %s17, 0
    %s20 = sadd.s32 %s19, 1
    %s21 = scalar_select %p18, %s19, %s20
    %p24 = pneg %p18
    %p25 = scmp.eq.s32.totalorder %s9, 1
    %p26 = por %p24, %p25
    %p27 = scmp.ne.s32.totalorder %s19, %s22
    %p28 = scmp.eq.s32.totalorder %s9, 0
    %p29 = por %p27, %p28
    %p30 = scmp.ne.s32.totalorder %s19, %s22
    %p31 = scmp.eq.s32.totalorder %s14, 1
    %p32 = por %p30, %p31
    %p33 = scmp.ne.s32.totalorder %s22, %s23
    %p34 = scmp.eq.s32.totalorder %s14, 0
    %p35 = por %p33, %p34
    %p36 = scmp.ne.s32.totalorder %s22, %s23
    %p37 = scmp.eq.s32.totalorder %s15, 1
    %p38 = por %p36, %p37
    %p40 = scmp.ne.s32.totalorder %s23, %s39
    %p41 = scmp.eq.s32.totalorder %s15, 0
    %p42 = por %p40, %p41
    %s44 = sadd.s32 %s43, 1
    %p47 = scmp.eq.s32.totalorder %s9, 1
    %p48 = scmp.ne.s32.totalorder %s43, %s45
    %p49 = scmp.eq.s32.totalorder %s9, 0
    %p50 = por %p48, %p49
    %p51 = scmp.ne.s32.totalorder %s43, %s45
    %p52 = scmp.eq.s32.totalorder %s14, 1
    %p53 = por %p51, %p52
    %p54 = scmp.ne.s32.totalorder %s45, %s46
    %p55 = scmp.eq.s32.totalorder %s14, 0
    %p56 = por %p54, %p55
    %p57 = scmp.ne.s32.totalorder %s45, %s46
    %p58 = scmp.eq.s32.totalorder %s15, 1
    %p59 = por %p57, %p58
    %p61 = scmp.ne.s32.totalorder %s46, %s60
    %p62 = scmp.eq.s32.totalorder %s15, 0
    %p63 = por %p61, %p62
    %s65 = sadd.s32 %s64, 1
    %p68 = scmp.eq.s32.totalorder %s9, 1
    %p69 = scmp.ne.s32.totalorder %s64, %s66
    %p70 = scmp.eq.s32.totalorder %s9, 0
    %p71 = por %p69, %p70
    %p72 = scmp.ne.s32.totalorder %s64, %s66
    %p73 = scmp.eq.s32.totalorder %s14, 1
    %p74 = por %p72, %p73
    %p75 = scmp.ne.s32.totalorder %s66, %s67
    %p76 = scmp.eq.s32.totalorder %s14, 0
    %p77 = por %p75, %p76
    %p78 = scmp.ne.s32.totalorder %s66, %s67
    %p79 = scmp.eq.s32.totalorder %s15, 1
    %p80 = por %p78, %p79
    %p82 = scmp.ne.s32.totalorder %s67, %s81
    %p83 = scmp.eq.s32.totalorder %s15, 0
    %p84 = por %p82, %p83
    %s85 = ssub.s32 %s9, %s16
    %p86 = scmp.eq.s32.totalorder %s85, 0
    %s88 = sadd.s32 %s87, 1
    %s89 = scalar_select %p86, %s87, %s88
    %p92 = pneg %p86
    %p93 = scmp.eq.s32.totalorder %s9, 1
    %p94 = por %p92, %p93
    %p95 = scmp.ne.s32.totalorder %s87, %s90
    %p96 = scmp.eq.s32.totalorder %s9, 0
    %p97 = por %p95, %p96
    %p98 = scmp.ne.s32.totalorder %s87, %s90
    %p99 = scmp.eq.s32.totalorder %s14, 1
    %p100 = por %p98, %p99
    %p101 = scmp.ne.s32.totalorder %s90, %s91
    %p102 = scmp.eq.s32.totalorder %s14, 0
    %p103 = por %p101, %p102
    %p104 = scmp.ne.s32.totalorder %s90, %s91
    %p105 = scmp.eq.s32.totalorder %s15, 1
    %p106 = por %p104, %p105
    %p108 = scmp.ne.s32.totalorder %s91, %s107
    %p109 = scmp.eq.s32.totalorder %s15, 0
    %p110 = por %p108, %p109
    %p111 = scmp.le.s32.totalorder 1, %s9
    %p112 = scmp.lt.s32.totalorder %s9, 3
    %p113 = pnand %p111, %p112
    %p114 = pneg %p113
    // Predicated region
    $region9: #{res_block_forward.2} parent=5 // pred_check
      _
    $region10: #{res_block_forward.2} parent=5 // pred_check_branch
      %116 = sbr.rel (%p113) target = $region12
    $region11: #{res_block_forward.2} parent=5 // pred_region
      %s117 = ssub.s32 %s9, 1
      // Predicated region
      $region13: #{res_block_forward.2} parent=11 // pred_check
        %p118 = pneg %p56
      $region14: #{res_block_forward.2} parent=11 // pred_check_branch
        %120 = sbr.rel (%p118) target = $region16
      $region15: #{res_block_forward.2} parent=11 // pred_region
        _
      $region16: #{res_block_forward.2} parent=11 // pred_fallthru
        _
      // Predicated region
      $region17: #{res_block_forward.2} parent=11 // pred_check
        %p121 = pneg %p77
      $region18: #{res_block_forward.2} parent=11 // pred_check_branch
        %123 = sbr.rel (%p121) target = $region20
      $region19: #{res_block_forward.2} parent=11 // pred_region
        _
      $region20: #{res_block_forward.2} parent=11 // pred_fallthru
        _
    $region12: #{res_block_forward.2} parent=5 // pred_fallthru
      _
    %p124 = scmp.lt.s32.totalorder %s9, 2
    // Predicated region
    $region21: #{res_block_forward.2} parent=5 // pred_check
      %p125 = pneg %p124
    $region22: #{res_block_forward.2} parent=5 // pred_check_branch
      %127 = sbr.rel (%p125) target = $region24
    $region23: #{res_block_forward.2} parent=5 // pred_region
      // Predicated region
      $region25: #{res_block_forward.2} parent=23 // pred_check
        %p128 = pneg %p29
      $region26: #{res_block_forward.2} parent=23 // pred_check_branch
        %130 = sbr.rel (%p128) target = $region28
      $region27: #{res_block_forward.2} parent=23 // pred_region
        %p131 = scmp.lt.s32.totalorder %s9, 1
        %s132 = scalar_select %p131, %s9, 1
        %s133 = smul.addr %s132, 4
        %s134 = smul.addr %s133, 4
        %s135 = scalar_lea.vmem %s0, %s134
      $region28: #{res_block_forward.2} parent=23 // pred_fallthru
        _
    $region24: #{res_block_forward.2} parent=5 // pred_fallthru
      _
    %p136 = scmp.le.s32.totalorder 1, %s9
    %p137 = scmp.lt.s32.totalorder %s9, 3
    %p138 = pnand %p136, %p137
    %p139 = pneg %p138
    // Predicated region
    $region29: #{res_block_forward.2} parent=5 // pred_check
      _
    $region30: #{res_block_forward.2} parent=5 // pred_check_branch
      %141 = sbr.rel (%p138) target = $region32
    $region31: #{res_block_forward.2} parent=5 // pred_region
      %s142 = ssub.s32 %s9, 1
      %p143 = scmp.lt.s32.totalorder %s14, 1
      %s144 = scalar_select %p143, %s14, 1
      %s145 = smul.addr %s144, 4
      %s146 = smul.addr %s145, 4
      %s147 = scalar_lea.vmem %s0, %s146
      %p148 = pneg %p35
      %p149 = pneg %p32
      %p150 = pneg %p56
      %p151 = pneg %p53
      %p152 = pneg %p77
      %p153 = pneg %p74
      %p154 = pneg %p103
      %p155 = pneg %p100
      %p156 = scmp.lt.s32.totalorder %s14, 1
      %s157 = scalar_select %p156, %s14, 1
      %s158 = smul.addr %s157, 3
      %s159 = smul.addr %s158, 2
      %s160 = scalar_lea.vmem %s3, %s159
      %p161 = scmp.lt.s32.totalorder %s14, 1
      %s162 = scalar_select %p161, %s14, 1
      %s163 = smul.addr %s162, 4
      %s164 = smul.addr %s163, 4
      %s165 = scalar_lea.vmem %s0, %s164
      %p166 = scmp.lt.s32.totalorder %s14, 1
      %s167 = scalar_select %p166, %s14, 1
      %s168 = smul.addr %s167, 3
      %s169 = smul.addr %s168, 2
      %s170 = scalar_lea.vmem %s3, %s169
      %v171 = vld [vmem:[%s165] sm:$0xff]
      %v172 = vld [vmem:[%s165 + $0x8] sm:$0xf]
      %v174 = vcombine.high %v171, %v171
      %176 = vst [vmem:[#allocation2] sm:$0xf] %v171
      %177 = vst [vmem:[#allocation2 + $0x8] sm:$0xf] %v174
      %178 = vst [vmem:[#allocation2 + $0x10] sm:$0xf] %v172
      %v179 = vld [vmem:[%s165] sm:$0xff]
      %v180 = vld [vmem:[%s165 + $0x8] sm:$0xff]
      %v183 = vcombine.low %v179, %v179
      %v184 = vcombine.low %v180, %v180
      %185 = vrot.lane.b32.xlu0 %v183, 127
      %v186 = vpop.permute.xlu0 %185
      %187 = vrot.lane.b32.xlu0 %v179, 127
      %v188 = vpop.permute.xlu0 %187
      %189 = vrot.lane.b32.xlu0 %v184, 127
      %v190 = vpop.permute.xlu0 %189
      %191 = vrot.lane.b32.xlu0 %v180, 127
      %v192 = vpop.permute.xlu0 %191
      %vm193 = vcmask 1039360
      %v194 = vsel %vm193, %v186, %v188
      %v195 = vsel %vm193, %v188, %v190
      %v196 = vsel %vm193, %v190, %v192
      %200 = vst [vmem:[#allocation2] sm:$0xf0] %v194
      %201 = vst [vmem:[#allocation2 + $0x8] sm:$0xf0] %v195
      %202 = vst [vmem:[#allocation2 + $0x10] sm:$0xf0] %v196
      %v203 = vld [vmem:[%s165] sm:$0xff]
      %v204 = vld [vmem:[%s165 + $0x8] sm:$0xff]
      %v207 = vcombine.high %v203, %v203
      %v208 = vcombine.high %v204, %v204
      %209 = vrot.lane.b32.xlu0 %v203, 126
      %v210 = vpop.permute.xlu0 %209
      %211 = vrot.lane.b32.xlu0 %v207, 126
      %v212 = vpop.permute.xlu0 %211
      %213 = vrot.lane.b32.xlu0 %v204, 126
      %v214 = vpop.permute.xlu0 %213
      %215 = vrot.lane.b32.xlu0 %v208, 126
      %v216 = vpop.permute.xlu0 %215
      %vm217 = vcmask 1031168
      %v218 = vsel %vm217, %v210, %v212
      %v219 = vsel %vm217, %v212, %v214
      %v220 = vsel %vm217, %v214, %v216
      %224 = vst [vmem:[#allocation2 + $0x18] sm:$0xf] %v218
      %225 = vst [vmem:[#allocation2 + $0x20] sm:$0xf] %v219
      %226 = vst [vmem:[#allocation2 + $0x28] sm:$0xf] %v220
      %v227 = vld [vmem:[%s165] sm:$0xff]
      %v228 = vld [vmem:[%s165 + $0x8] sm:$0xff]
      %v231 = vcombine.low %v227, %v227
      %v232 = vcombine.low %v228, %v228
      %233 = vrot.lane.b32.xlu0 %v231, 104
      %v234 = vpop.permute.xlu0 %233
      %235 = vrot.lane.b32.xlu0 %v227, 104
      %v236 = vpop.permute.xlu0 %235
      %237 = vrot.lane.b32.xlu0 %v232, 104
      %v238 = vpop.permute.xlu0 %237
      %239 = vrot.lane.b32.xlu0 %v228, 104
      %v240 = vpop.permute.xlu0 %239
      %vm241 = vcmask 850944
      %v242 = vsel %vm241, %v234, %v236
      %v243 = vsel %vm241, %v236, %v238
      %v244 = vsel %vm241, %v238, %v240
      %248 = vst [vmem:[#allocation2 + $0x18] sm:$0xf0] %v242
      %249 = vst [vmem:[#allocation2 + $0x20] sm:$0xf0] %v243
      %250 = vst [vmem:[#allocation2 + $0x28] sm:$0xf0] %v244
      %v251 = vld [vmem:[%s165] sm:$0xff]
      %v252 = vld [vmem:[%s165 + $0x8] sm:$0xff]
      %v255 = vcombine.high %v251, %v251
      %v256 = vcombine.high %v252, %v252
      %257 = vrot.lane.b32.xlu0 %v251, 103
      %v258 = vpop.permute.xlu0 %257
      %259 = vrot.lane.b32.xlu0 %v255, 103
      %v260 = vpop.permute.xlu0 %259
      %261 = vrot.lane.b32.xlu0 %v252, 103
      %v262 = vpop.permute.xlu0 %261
      %263 = vrot.lane.b32.xlu0 %v256, 103
      %v264 = vpop.permute.xlu0 %263
      %vm265 = vcmask 842752
      %v266 = vsel %vm265, %v258, %v260
      %v267 = vsel %vm265, %v260, %v262
      %v268 = vsel %vm265, %v262, %v264
      %272 = vst [vmem:[#allocation2 + $0x30] sm:$0xf] %v266
      %273 = vst [vmem:[#allocation2 + $0x38] sm:$0xf] %v267
      %274 = vst [vmem:[#allocation2 + $0x40] sm:$0xf] %v268
      %v275 = vld [vmem:[%s165] sm:$0xff]
      %v276 = vld [vmem:[%s165 + $0x8] sm:$0xff]
      %v279 = vcombine.low %v275, %v275
      %v280 = vcombine.low %v276, %v276
      %281 = vrot.lane.b32.xlu0 %v279, 102
      %v282 = vpop.permute.xlu0 %281
      %283 = vrot.lane.b32.xlu0 %v275, 102
      %v284 = vpop.permute.xlu0 %283
      %285 = vrot.lane.b32.xlu0 %v280, 102
      %v286 = vpop.permute.xlu0 %285
      %287 = vrot.lane.b32.xlu0 %v276, 102
      %v288 = vpop.permute.xlu0 %287
      %vm289 = vcmask 834560
      %v290 = vsel %vm289, %v282, %v284
      %v291 = vsel %vm289, %v284, %v286
      %v292 = vsel %vm289, %v286, %v288
      %296 = vst [vmem:[#allocation2 + $0x30] sm:$0xf0] %v290
      %297 = vst [vmem:[#allocation2 + $0x38] sm:$0xf0] %v291
      %298 = vst [vmem:[#allocation2 + $0x40] sm:$0xf0] %v292
      %v299 = vld [vmem:[%s165] sm:$0xff]
      %v300 = vld [vmem:[%s165 + $0x8] sm:$0xff]
      %v303 = vcombine.high %v299, %v299
      %v304 = vcombine.high %v300, %v300
      %305 = vrot.lane.b32.xlu0 %v299, 80
      %v306 = vpop.permute.xlu0 %305
      %307 = vrot.lane.b32.xlu0 %v303, 80
      %v308 = vpop.permute.xlu0 %307
      %309 = vrot.lane.b32.xlu0 %v300, 80
      %v310 = vpop.permute.xlu0 %309
      %311 = vrot.lane.b32.xlu0 %v304, 80
      %v312 = vpop.permute.xlu0 %311
      %vm313 = vcmask 654336
      %v314 = vsel %vm313, %v306, %v308
      %v315 = vsel %vm313, %v308, %v310
      %v316 = vsel %vm313, %v310, %v312
      %320 = vst [vmem:[#allocation2 + $0x48] sm:$0xf] %v314
      %321 = vst [vmem:[#allocation2 + $0x50] sm:$0xf] %v315
      %322 = vst [vmem:[#allocation2 + $0x58] sm:$0xf] %v316
      %v323 = vld [vmem:[%s165] sm:$0xff]
      %v324 = vld [vmem:[%s165 + $0x8] sm:$0xff]
      %v327 = vcombine.low %v323, %v323
      %v328 = vcombine.low %v324, %v324
      %329 = vrot.lane.b32.xlu0 %v327, 79
      %v330 = vpop.permute.xlu0 %329
      %331 = vrot.lane.b32.xlu0 %v323, 79
      %v332 = vpop.permute.xlu0 %331
      %333 = vrot.lane.b32.xlu0 %v328, 79
      %v334 = vpop.permute.xlu0 %333
      %335 = vrot.lane.b32.xlu0 %v324, 79
      %v336 = vpop.permute.xlu0 %335
      %vm337 = vcmask 646144
      %v338 = vsel %vm337, %v330, %v332
      %v339 = vsel %vm337, %v332, %v334
      %v340 = vsel %vm337, %v334, %v336
      %344 = vst [vmem:[#allocation2 + $0x48] sm:$0xf0] %v338
      %345 = vst [vmem:[#allocation2 + $0x50] sm:$0xf0] %v339
      %346 = vst [vmem:[#allocation2 + $0x58] sm:$0xf0] %v340
      %v347 = vld [vmem:[%s165] sm:$0xff]
      %v348 = vld [vmem:[%s165 + $0x8] sm:$0xff]
      %v351 = vcombine.high %v347, %v347
      %v352 = vcombine.high %v348, %v348
      %353 = vrot.lane.b32.xlu0 %v347, 78
      %v354 = vpop.permute.xlu0 %353
      %355 = vrot.lane.b32.xlu0 %v351, 78
      %v356 = vpop.permute.xlu0 %355
      %357 = vrot.lane.b32.xlu0 %v348, 78
      %v358 = vpop.permute.xlu0 %357
      %359 = vrot.lane.b32.xlu0 %v352, 78
      %v360 = vpop.permute.xlu0 %359
      %vm361 = vcmask 637952
      %v362 = vsel %vm361, %v354, %v356
      %v363 = vsel %vm361, %v356, %v358
      %v364 = vsel %vm361, %v358, %v360
      %368 = vst [vmem:[#allocation2 + $0x60] sm:$0xf] %v362
      %369 = vst [vmem:[#allocation2 + $0x68] sm:$0xf] %v363
      %370 = vst [vmem:[#allocation2 + $0x70] sm:$0xf] %v364
      %v371 = vld [vmem:[%s1] sm:$0xf]
      %v372 = vld [vmem:[#allocation2] sm:$0xff]
      %v373 = vld [vmem:[#allocation2 + $0x8] sm:$0xff]
      %v374 = vld [vmem:[#allocation2 + $0x10] sm:$0xff]
      %v375 = vld [vmem:[#allocation2 + $0x18] sm:$0xff]
      %v376 = vld [vmem:[#allocation2 + $0x20] sm:$0xff]
      %v377 = vld [vmem:[#allocation2 + $0x28] sm:$0xff]
      %v378 = vld [vmem:[#allocation2 + $0x30] sm:$0xff]
      %v379 = vld [vmem:[#allocation2 + $0x38] sm:$0xff]
      %v380 = vld [vmem:[#allocation2 + $0x40] sm:$0xff]
      %v381 = vld [vmem:[#allocation2 + $0x48] sm:$0xff]
      %v382 = vld [vmem:[#allocation2 + $0x50] sm:$0xff]
      %v383 = vld [vmem:[#allocation2 + $0x58] sm:$0xff]
      %v384 = vld [vmem:[#allocation2 + $0x60] sm:$0xf]
      %v385 = vld [vmem:[#allocation2 + $0x68] sm:$0xf]
      %v386 = vld [vmem:[#allocation2 + $0x70] sm:$0xf]
      %v387 = vld [vmem:[%s2] sm:$0xf]
      %389 = vset.pattern.permute.xlu0 0
      %390 = vperm.xlu0 %389, %v387
      %v391 = vpop.permute.xlu0 %390
      %vm393 = vcmask 293888
      %v395 = vsel %vm393, %v371, 0
      %vm397 = vcmask 1043456
      %v399 = vsel %vm397, %v384, 0
      %v402 = vsel %vm397, %v385, 0
      %v405 = vsel %vm397, %v386, 0
      %407 = vmatprep.subr.mxu0 0.0
      %408 = vmatpush1.msra.mxu0 0.0
      %409 = vmatprep.subr.mxu0 0.0
      %410 = vmatpush1.msra.mxu0 0.0
      %411 = vmatprep.subr.mxu0 0.0
      %412 = vmatpush1.msra.mxu0 0.0
      %413 = vmatprep.subr.mxu0 0.0
      %414 = vmatpush1.msra.mxu0 0.0
      %415 = vmatprep.subr.mxu0 0.0
      %416 = vmatpush1.msra.mxu0 0.0
      %417 = vmatprep.subr.mxu0 0.0
      %418 = vmatpush1.msra.mxu0 0.0
      %419 = vmatprep.subr.mxu0 0.0
      %420 = vmatpush1.msra.mxu0 0.0
      %421 = vmatprep.subr.mxu0 0.0
      %422 = vmatpush1.msra.mxu0 0.0
      %423 = vmatprep.subr.mxu0 0.0
      %424 = vmatpush1.msra.mxu0 0.0
      %425 = vmatprep.subr.mxu0 0.0
      %426 = vmatpush1.msra.mxu0 0.0
      %427 = vmatprep.subr.mxu0 0.0
      %428 = vmatpush1.msra.mxu0 0.0
      %429 = vmatprep.subr.mxu0 %v402
      %430 = vmatpush1.msra.mxu0 %v399
      %431 = vmatprep.subr.mxu0 %v382
      %432 = vmatpush1.msra.mxu0 %v381
      %433 = vmatprep.subr.mxu0 %v379
      %434 = vmatpush1.msra.mxu0 %v378
      %435 = vmatprep.subr.mxu0 %v376
      %436 = vmatpush1.msra.mxu0 %v375
      %437 = vmatprep.subr.mxu0 %v373
      %438 = vmatpush1.msra.mxu0 %v372
      %439 = vmatprep.subr.mxu0 0.0
      %440 = vmatpush2.msra.mxu0 0.0
      %441 = vmatprep.subr.mxu0 0.0
      %442 = vmatpush2.msra.mxu0 0.0
      %443 = vmatprep.subr.mxu0 0.0
      %444 = vmatpush2.msra.mxu0 0.0
      %445 = vmatprep.subr.mxu0 0.0
      %446 = vmatpush2.msra.mxu0 0.0
      %447 = vmatprep.subr.mxu0 0.0
      %448 = vmatpush2.msra.mxu0 0.0
      %449 = vmatprep.subr.mxu0 0.0
      %450 = vmatpush2.msra.mxu0 0.0
      %451 = vmatprep.subr.mxu0 0.0
      %452 = vmatpush2.msra.mxu0 0.0
      %453 = vmatprep.subr.mxu0 0.0
      %454 = vmatpush2.msra.mxu0 0.0
      %455 = vmatprep.subr.mxu0 0.0
      %456 = vmatpush2.msra.mxu0 0.0
      %457 = vmatprep.subr.mxu0 0.0
      %458 = vmatpush2.msra.mxu0 0.0
      %459 = vmatprep.subr.mxu0 0.0
      %460 = vmatpush2.msra.mxu0 0.0
      %461 = vmatprep.subr.mxu0 0.0
      %462 = vmatpush2.msra.mxu0 0.0
      %463 = vmatprep.subr.mxu0 0.0
      %464 = vmatpush2.msra.mxu0 0.0
      %465 = vmatprep.subr.mxu0 0.0
      %466 = vmatpush2.msra.mxu0 0.0
      %467 = vmatprep.subr.mxu0 0.0
      %468 = vmatpush2.msra.mxu0 0.0
      %469 = vmatprep.subr.mxu0 0.0
      %470 = vmatpush2.msra.mxu0 0.0
      %471 = vmatprep.mubr.f32.mxu0 0.0
      %472 = vmatmul.mubr.f32.gmra.mxu0 %v395
      %v473 = vpop.f32.mrf.mxu0
      %v474 = vadd.f32 %v391, %v473
      %v475 = vpop.f32.mrf.mxu0
      %v476 = vadd.f32 %v391, %v475
      %477 = vdwg.mxu0
      %478 = vmatprep.subr.mxu0 0.0
      %479 = vmatpush1.msra.mxu0 0.0
      %480 = vmatprep.subr.mxu0 0.0
      %481 = vmatpush1.msra.mxu0 0.0
      %482 = vmatprep.subr.mxu0 0.0
      %483 = vmatpush1.msra.mxu0 0.0
      %484 = vmatprep.subr.mxu0 0.0
      %485 = vmatpush1.msra.mxu0 0.0
      %486 = vmatprep.subr.mxu0 0.0
      %487 = vmatpush1.msra.mxu0 0.0
      %488 = vmatprep.subr.mxu0 0.0
      %489 = vmatpush1.msra.mxu0 0.0
      %490 = vmatprep.subr.mxu0 0.0
      %491 = vmatpush1.msra.mxu0 0.0
      %492 = vmatprep.subr.mxu0 0.0
      %493 = vmatpush1.msra.mxu0 0.0
      %494 = vmatprep.subr.mxu0 0.0
      %495 = vmatpush1.msra.mxu0 0.0
      %496 = vmatprep.subr.mxu0 0.0
      %497 = vmatpush1.msra.mxu0 0.0
      %498 = vmatprep.subr.mxu0 0.0
      %499 = vmatpush1.msra.mxu0 0.0
      %500 = vmatprep.subr.mxu0 0.0
      %501 = vmatpush1.msra.mxu0 %v405
      %502 = vmatprep.subr.mxu0 0.0
      %503 = vmatpush1.msra.mxu0 %v383
      %504 = vmatprep.subr.mxu0 0.0
      %505 = vmatpush1.msra.mxu0 %v380
      %506 = vmatprep.subr.mxu0 0.0
      %507 = vmatpush1.msra.mxu0 %v377
      %508 = vmatprep.subr.mxu0 0.0
      %509 = vmatpush1.msra.mxu0 %v374
      %510 = vmatprep.subr.mxu0 0.0
      %511 = vmatpush2.msra.mxu0 0.0
      %512 = vmatprep.subr.mxu0 0.0
      %513 = vmatpush2.msra.mxu0 0.0
      %514 = vmatprep.subr.mxu0 0.0
      %515 = vmatpush2.msra.mxu0 0.0
      %516 = vmatprep.subr.mxu0 0.0
      %517 = vmatpush2.msra.mxu0 0.0
      %518 = vmatprep.subr.mxu0 0.0
      %519 = vmatpush2.msra.mxu0 0.0
      %520 = vmatprep.subr.mxu0 0.0
      %521 = vmatpush2.msra.mxu0 0.0
      %522 = vmatprep.subr.mxu0 0.0
      %523 = vmatpush2.msra.mxu0 0.0
      %524 = vmatprep.subr.mxu0 0.0
      %525 = vmatpush2.msra.mxu0 0.0
      %526 = vmatprep.subr.mxu0 0.0
      %527 = vmatpush2.msra.mxu0 0.0
      %528 = vmatprep.subr.mxu0 0.0
      %529 = vmatpush2.msra.mxu0 0.0
      %530 = vmatprep.subr.mxu0 0.0
      %531 = vmatpush2.msra.mxu0 0.0
      %532 = vmatprep.subr.mxu0 0.0
      %533 = vmatpush2.msra.mxu0 0.0
      %534 = vmatprep.subr.mxu0 0.0
      %535 = vmatpush2.msra.mxu0 0.0
      %536 = vmatprep.subr.mxu0 0.0
      %537 = vmatpush2.msra.mxu0 0.0
      %538 = vmatprep.subr.mxu0 0.0
      %539 = vmatpush2.msra.mxu0 0.0
      %540 = vmatprep.subr.mxu0 0.0
      %541 = vmatpush2.msra.mxu0 0.0
      %542 = vmatprep.mubr.f32.mxu0 0.0
      %543 = vmatmul.mubr.f32.gmra.mxu0 %v395
      %v544 = vpop.f32.mrf.mxu0
      %v545 = vadd.f32 %v391, %v544
      %v546 = vpop.f32.mrf.mxu0
      %547 = vdwg.mxu0
      %vm548 = vcmp.ge.f32.partialorder %v474, 0.0
      %vm549 = vcmp.ge.f32.partialorder %v476, 0.0
      %vm550 = vcmp.ge.f32.partialorder %v545, 0.0
      %v551 = vmul.f32 %v474, 0.2
      %v552 = vmul.f32 %v476, 0.2
      %v553 = vmul.f32 %v545, 0.2
      %v554 = vsel %vm548, %v474, %v551
      %v555 = vsel %vm549, %v476, %v552
      %v556 = vsel %vm550, %v545, %v553
      %v557 = vmul.f32 %v554, 1.4142135
      %v558 = vmul.f32 %v555, 1.4142135
      %v559 = vmul.f32 %v556, 1.4142135
      %v560 = vpack.c.bf16 %v557, %v557
      %v561 = vpack.c.bf16 %v558, %v558
      %v562 = vpack.c.bf16 %v559, %v559
      %v566 = vcombine.low %v560, %v561
      %v568 = vunpack.c.l.s4 1983009808
      %v569 = vunpack.c.0.s8 %v568
      %v570 = vlaneseq
      %v571 = vshrl.u32 %v570, 7
      %v572 = vsub.s32 %v569, %v571
      %v573 = vrot.slane %v566, %v572
      %v575 = vunpack.c.l.s4 1983009808
      %v576 = vunpack.c.0.s8 %v575
      %v577 = vlaneseq
      %v578 = vshrl.u32 %v577, 7
      %v579 = vsub.s32 %v576, %v578
      %v580 = vrot.slane %v562, %v579
      %v581 = vcombine.low %v573, %v580
      %583 = vst [vmem:[%s170] sm:$0x3f] %v581
      %p584 = scmp.lt.s32.totalorder %s14, 1
      %s585 = scalar_select %p584, %s14, 1
      %s586 = smul.addr %s585, 3
      %s587 = smul.addr %s586, 2
      %s588 = scalar_lea.vmem %s3, %s587
      // Predicated region
      $region33: #{res_block_forward.2} parent=31 // pred_check
        %p589 = pneg %p100
      $region34: #{res_block_forward.2} parent=31 // pred_check_branch
        %591 = sbr.rel (%p589) target = $region36
      $region35: #{res_block_forward.2} parent=31 // pred_region
        _
      $region36: #{res_block_forward.2} parent=31 // pred_fallthru
        _
    $region32: #{res_block_forward.2} parent=5 // pred_fallthru
      _
    %p592 = scmp.le.s32.totalorder 2, %s9
    // Predicated region
    $region37: #{res_block_forward.2} parent=5 // pred_check
      %p593 = pneg %p592
    $region38: #{res_block_forward.2} parent=5 // pred_check_branch
      %595 = sbr.rel (%p593) target = $region40
    $region39: #{res_block_forward.2} parent=5 // pred_region
      %s596 = ssub.s32 %s9, 2
      // Predicated region
      $region41: #{res_block_forward.2} parent=39 // pred_check
        %p597 = pneg %p106
      $region42: #{res_block_forward.2} parent=39 // pred_check_branch
        %599 = sbr.rel (%p597) target = $region44
      $region43: #{res_block_forward.2} parent=39 // pred_region
        %p600 = scmp.lt.s32.totalorder %s15, 1
        %s601 = scalar_select %p600, %s15, 1
        %s602 = smul.addr %s601, 3
        %s603 = smul.addr %s602, 2
        %s604 = scalar_lea.vmem %s3, %s603
      $region44: #{res_block_forward.2} parent=39 // pred_fallthru
        _
    $region40: #{res_block_forward.2} parent=5 // pred_fallthru
      _
  $region6: #{res_block_forward.2} parent=0 // loop_footer
    %s13 = sadd.s32 1, %s9
  $region7: #{res_block_forward.2} parent=0 // loop_footer_branch
    %8 = sbr.rel target = $region3
  $region8: #{res_block_forward.2} parent=0 // loop_exit
    _

// kernel: res_block_forward.3
$region0: #{res_block_forward.3}
  #allocation0 [shape = 'u32[]', space=smem, size = 0x4, offset = 0x4, fixed_abs, tag = 'smem constant byte address 0x4 - core index']
  #allocation1 [shape = 'u32[144,128]{1,0:T(1,128)}', space=vmem, size = 0x12000, scoped, tag = 'internal scratch']
  #allocation2 [shape = 'f32[144,128]{1,0:T(8,128)}', space=vmem, size = 0x12000, scoped, tag = 'scratch operand']
  #allocation3 [shape = 'f32[64,128]{1,0:T(8,128)}', space=vmem, size = 0x8000, scoped, tag = 'scratch operand']
  %s0 = inlined_call_operand.vmem [shape: bf16[2,16,256], index: 0, kind: input, shape index: {}]
  %s1 = inlined_call_operand.vmem [shape: f32[2,16,256], index: 1, kind: input, shape index: {}]
  %s2 = inlined_call_operand.vmem [shape: f32[8,144], index: 2, kind: input, shape index: {}]
  %s3 = inlined_call_operand.vmem [shape: f32[8,1], index: 3, kind: input, shape index: {}]
  %s4 = inlined_call_operand.vmem [shape: f32[8,64], index: 4, kind: input, shape index: {}]
  %s5 = inlined_call_operand.vmem [shape: f32[2,8,128], index: 5, kind: output, shape index: {}]
  %s6 = sld [smem:[#allocation0]]
  $region53: #{res_block_forward.3} parent=0
    _
  %s8 = ssub.s32 1, %s6
  %s9 = scalar_select 0, %s8, %s6
  loop: start=0, step=1, limit=4
  $region2: #{res_block_forward.3} parent=0 // loop_pre_header
    _
  $region3: #{res_block_forward.3} parent=0 // loop_header
    %s11 = sphi 0, %s15
    %p12 = scmp.ge.s32.totalorder %s11, 4
    %s21 = sphi 0, %s23
    %s24 = sphi 0, %s21
    %s25 = sphi 0, %s24
    %s41 = sphi 0, %s25
    %s47 = sphi 0, %s49
    %s50 = sphi 0, %s47
    %s51 = sphi 0, %s50
    %s67 = sphi 0, %s51
    %s71 = sphi 0, %s71
    %s73 = sphi 0, %s71
    %s74 = sphi 0, %s73
    %s88 = sphi 0, %s74
    %s92 = sphi 0, %s92
    %s94 = sphi 0, %s92
    %s95 = sphi 0, %s94
    %s109 = sphi 0, %s95
    %s113 = sphi 0, %s113
    %s115 = sphi 0, %s113
    %s116 = sphi 0, %s115
    %s130 = sphi 0, %s116
    %s136 = sphi 0, %s138
    %s139 = sphi 0, %s136
    %s140 = sphi 0, %s139
    %s156 = sphi 0, %s140
  $region4: #{res_block_forward.3} parent=0 // loop_header_branch
    %14 = sbr.rel (%p12) target = $region8
  $region5: #{res_block_forward.3} parent=0 // loop_body
    %s16 = ssub.s32 %s11, 1
    %s17 = ssub.s32 %s11, 2
    %s18 = sadd.s32 %s11, 1
    %s19 = ssub.s32 %s11, %s18
    %p20 = scmp.eq.s32.totalorder %s19, 0
    %s22 = sadd.s32 %s21, 1
    %s23 = scalar_select %p20, %s21, %s22
    %p26 = pneg %p20
    %p27 = scmp.eq.s32.totalorder %s11, 1
    %p28 = por %p26, %p27
    %p29 = scmp.ne.s32.totalorder %s21, %s24
    %p30 = scmp.eq.s32.totalorder %s11, 0
    %p31 = por %p29, %p30
    %p32 = scmp.ne.s32.totalorder %s21, %s24
    %p33 = scmp.eq.s32.totalorder %s16, 1
    %p34 = por %p32, %p33
    %p35 = scmp.ne.s32.totalorder %s24, %s25
    %p36 = scmp.eq.s32.totalorder %s16, 0
    %p37 = por %p35, %p36
    %p38 = scmp.ne.s32.totalorder %s24, %s25
    %p39 = scmp.eq.s32.totalorder %s17, 1
    %p40 = por %p38, %p39
    %p42 = scmp.ne.s32.totalorder %s25, %s41
    %p43 = scmp.eq.s32.totalorder %s17, 0
    %p44 = por %p42, %p43
    %s45 = ssub.s32 %s11, %s18
    %p46 = scmp.eq.s32.totalorder %s45, 0
    %s48 = sadd.s32 %s47, 1
    %s49 = scalar_select %p46, %s47, %s48
    %p52 = pneg %p46
    %p53 = scmp.eq.s32.totalorder %s11, 1
    %p54 = por %p52, %p53
    %p55 = scmp.ne.s32.totalorder %s47, %s50
    %p56 = scmp.eq.s32.totalorder %s11, 0
    %p57 = por %p55, %p56
    %p58 = scmp.ne.s32.totalorder %s47, %s50
    %p59 = scmp.eq.s32.totalorder %s16, 1
    %p60 = por %p58, %p59
    %p61 = scmp.ne.s32.totalorder %s50, %s51
    %p62 = scmp.eq.s32.totalorder %s16, 0
    %p63 = por %p61, %p62
    %p64 = scmp.ne.s32.totalorder %s50, %s51
    %p65 = scmp.eq.s32.totalorder %s17, 1
    %p66 = por %p64, %p65
    %p68 = scmp.ne.s32.totalorder %s51, %s67
    %p69 = scmp.eq.s32.totalorder %s17, 0
    %p70 = por %p68, %p69
    %s72 = sadd.s32 %s71, 1
    %p75 = scmp.eq.s32.totalorder %s11, 1
    %p76 = scmp.ne.s32.totalorder %s71, %s73
    %p77 = scmp.eq.s32.totalorder %s11, 0
    %p78 = por %p76, %p77
    %p79 = scmp.ne.s32.totalorder %s71, %s73
    %p80 = scmp.eq.s32.totalorder %s16, 1
    %p81 = por %p79, %p80
    %p82 = scmp.ne.s32.totalorder %s73, %s74
    %p83 = scmp.eq.s32.totalorder %s16, 0
    %p84 = por %p82, %p83
    %p85 = scmp.ne.s32.totalorder %s73, %s74
    %p86 = scmp.eq.s32.totalorder %s17, 1
    %p87 = por %p85, %p86
    %p89 = scmp.ne.s32.totalorder %s74, %s88
    %p90 = scmp.eq.s32.totalorder %s17, 0
    %p91 = por %p89, %p90
    %s93 = sadd.s32 %s92, 1
    %p96 = scmp.eq.s32.totalorder %s11, 1
    %p97 = scmp.ne.s32.totalorder %s92, %s94
    %p98 = scmp.eq.s32.totalorder %s11, 0
    %p99 = por %p97, %p98
    %p100 = scmp.ne.s32.totalorder %s92, %s94
    %p101 = scmp.eq.s32.totalorder %s16, 1
    %p102 = por %p100, %p101
    %p103 = scmp.ne.s32.totalorder %s94, %s95
    %p104 = scmp.eq.s32.totalorder %s16, 0
    %p105 = por %p103, %p104
    %p106 = scmp.ne.s32.totalorder %s94, %s95
    %p107 = scmp.eq.s32.totalorder %s17, 1
    %p108 = por %p106, %p107
    %p110 = scmp.ne.s32.totalorder %s95, %s109
    %p111 = scmp.eq.s32.totalorder %s17, 0
    %p112 = por %p110, %p111
    %s114 = sadd.s32 %s113, 1
    %p117 = scmp.eq.s32.totalorder %s11, 1
    %p118 = scmp.ne.s32.totalorder %s113, %s115
    %p119 = scmp.eq.s32.totalorder %s11, 0
    %p120 = por %p118, %p119
    %p121 = scmp.ne.s32.totalorder %s113, %s115
    %p122 = scmp.eq.s32.totalorder %s16, 1
    %p123 = por %p121, %p122
    %p124 = scmp.ne.s32.totalorder %s115, %s116
    %p125 = scmp.eq.s32.totalorder %s16, 0
    %p126 = por %p124, %p125
    %p127 = scmp.ne.s32.totalorder %s115, %s116
    %p128 = scmp.eq.s32.totalorder %s17, 1
    %p129 = por %p127, %p128
    %p131 = scmp.ne.s32.totalorder %s116, %s130
    %p132 = scmp.eq.s32.totalorder %s17, 0
    %p133 = por %p131, %p132
    %s134 = ssub.s32 %s11, %s18
    %p135 = scmp.eq.s32.totalorder %s134, 0
    %s137 = sadd.s32 %s136, 1
    %s138 = scalar_select %p135, %s136, %s137
    %p141 = pneg %p135
    %p142 = scmp.eq.s32.totalorder %s11, 1
    %p143 = por %p141, %p142
    %p144 = scmp.ne.s32.totalorder %s136, %s139
    %p145 = scmp.eq.s32.totalorder %s11, 0
    %p146 = por %p144, %p145
    %p147 = scmp.ne.s32.totalorder %s136, %s139
    %p148 = scmp.eq.s32.totalorder %s16, 1
    %p149 = por %p147, %p148
    %p150 = scmp.ne.s32.totalorder %s139, %s140
    %p151 = scmp.eq.s32.totalorder %s16, 0
    %p152 = por %p150, %p151
    %p153 = scmp.ne.s32.totalorder %s139, %s140
    %p154 = scmp.eq.s32.totalorder %s17, 1
    %p155 = por %p153, %p154
    %p157 = scmp.ne.s32.totalorder %s140, %s156
    %p158 = scmp.eq.s32.totalorder %s17, 0
    %p159 = por %p157, %p158
    %p160 = scmp.le.s32.totalorder 1, %s11
    %p161 = scmp.lt.s32.totalorder %s11, 3
    %p162 = pnand %p160, %p161
    %p163 = pneg %p162
    // Predicated region
    $region9: #{res_block_forward.3} parent=5 // pred_check
      _
    $region10: #{res_block_forward.3} parent=5 // pred_check_branch
      %165 = sbr.rel (%p162) target = $region12
    $region11: #{res_block_forward.3} parent=5 // pred_region
      %s166 = ssub.s32 %s11, 1
      // Predicated region
      $region13: #{res_block_forward.3} parent=11 // pred_check
        %p167 = pneg %p84
      $region14: #{res_block_forward.3} parent=11 // pred_check_branch
        %169 = sbr.rel (%p167) target = $region16
      $region15: #{res_block_forward.3} parent=11 // pred_region
        _
      $region16: #{res_block_forward.3} parent=11 // pred_fallthru
        _
      // Predicated region
      $region17: #{res_block_forward.3} parent=11 // pred_check
        %p170 = pneg %p105
      $region18: #{res_block_forward.3} parent=11 // pred_check_branch
        %172 = sbr.rel (%p170) target = $region20
      $region19: #{res_block_forward.3} parent=11 // pred_region
        _
      $region20: #{res_block_forward.3} parent=11 // pred_fallthru
        _
      // Predicated region
      $region21: #{res_block_forward.3} parent=11 // pred_check
        %p173 = pneg %p126
      $region22: #{res_block_forward.3} parent=11 // pred_check_branch
        %175 = sbr.rel (%p173) target = $region24
      $region23: #{res_block_forward.3} parent=11 // pred_region
        _
      $region24: #{res_block_forward.3} parent=11 // pred_fallthru
        _
    $region12: #{res_block_forward.3} parent=5 // pred_fallthru
      _
    %p176 = scmp.lt.s32.totalorder %s11, 2
    // Predicated region
    $region25: #{res_block_forward.3} parent=5 // pred_check
      %p177 = pneg %p176
    $region26: #{res_block_forward.3} parent=5 // pred_check_branch
      %179 = sbr.rel (%p177) target = $region28
    $region27: #{res_block_forward.3} parent=5 // pred_region
      // Predicated region
      $region29: #{res_block_forward.3} parent=27 // pred_check
        %p180 = pneg %p31
      $region30: #{res_block_forward.3} parent=27 // pred_check_branch
        %182 = sbr.rel (%p180) target = $region32
      $region31: #{res_block_forward.3} parent=27 // pred_region
        %p183 = scmp.lt.s32.totalorder %s11, 1
        %s184 = scalar_select %p183, %s11, 1
        %s185 = smul.addr %s184, 4
        %s186 = smul.addr %s185, 4
        %s187 = scalar_lea.vmem %s0, %s186
      $region32: #{res_block_forward.3} parent=27 // pred_fallthru
        _
      // Predicated region
      $region33: #{res_block_forward.3} parent=27 // pred_check
        %p188 = pneg %p57
      $region34: #{res_block_forward.3} parent=27 // pred_check_branch
        %190 = sbr.rel (%p188) target = $region36
      $region35: #{res_block_forward.3} parent=27 // pred_region
        %p191 = scmp.lt.s32.totalorder %s11, 1
        %s192 = scalar_select %p191, %s11, 1
        %s193 = smul.addr %s192, 4
        %s194 = smul.addr %s193, 8
        %s195 = scalar_lea.vmem %s1, %s194
      $region36: #{res_block_forward.3} parent=27 // pred_fallthru
        _
    $region28: #{res_block_forward.3} parent=5 // pred_fallthru
      _
    %p196 = scmp.le.s32.totalorder 1, %s11
    %p197 = scmp.lt.s32.totalorder %s11, 3
    %p198 = pnand %p196, %p197
    %p199 = pneg %p198
    // Predicated region
    $region37: #{res_block_forward.3} parent=5 // pred_check
      _
    $region38: #{res_block_forward.3} parent=5 // pred_check_branch
      %201 = sbr.rel (%p198) target = $region40
    $region39: #{res_block_forward.3} parent=5 // pred_region
      %s202 = ssub.s32 %s11, 1
      %p203 = scmp.lt.s32.totalorder %s16, 1
      %s204 = scalar_select %p203, %s16, 1
      %s205 = smul.addr %s204, 4
      %s206 = smul.addr %s205, 4
      %s207 = scalar_lea.vmem %s0, %s206
      %p208 = pneg %p37
      %p209 = pneg %p34
      %p210 = scmp.lt.s32.totalorder %s16, 1
      %s211 = scalar_select %p210, %s16, 1
      %s212 = smul.addr %s211, 4
      %s213 = smul.addr %s212, 8
      %s214 = scalar_lea.vmem %s1, %s213
      %p215 = pneg %p63
      %p216 = pneg %p60
      %p217 = pneg %p84
      %p218 = pneg %p81
      %p219 = pneg %p105
      %p220 = pneg %p102
      %p221 = pneg %p126
      %p222 = pneg %p123
      %p223 = pneg %p152
      %p224 = pneg %p149
      %p225 = scmp.lt.s32.totalorder %s16, 1
      %s226 = scalar_select %p225, %s16, 1
      %s227 = smul.addr %s226, 8
      %s228 = scalar_lea.vmem %s5, %s227
      %p229 = scmp.lt.s32.totalorder %s16, 1
      %s230 = scalar_select %p229, %s16, 1
      %s231 = smul.addr %s230, 4
      %s232 = smul.addr %s231, 4
      %s233 = scalar_lea.vmem %s0, %s232
      %p234 = scmp.lt.s32.totalorder %s16, 1
      %s235 = scalar_select %p234, %s16, 1
      %s236 = smul.addr %s235, 4
      %s237 = smul.addr %s236, 8
      %s238 = scalar_lea.vmem %s1, %s237
      %p239 = scmp.lt.s32.totalorder %s16, 1
      %s240 = scalar_select %p239, %s16, 1
      %s241 = smul.addr %s240, 8
      %s242 = scalar_lea.vmem %s5, %s241
      %v243 = vld [vmem:[%s233] sm:$0xf]
      %v244 = vld [vmem:[%s233 + $0x8] sm:$0xf]
      %v245 = vunpack.c.l.bf16 %v243
      %v246 = vunpack.c.l.bf16 %v244
      %247 = vst [vmem:[#allocation2] sm:$0xff] %v245
      %248 = vst [vmem:[#allocation2 + $0x8] sm:$0xff] %v246
      %v249 = vld [vmem:[%s233] sm:$0xff]
      %v250 = vld [vmem:[%s233 + $0x8] sm:$0xff]
      %v251 = vunpack.c.l.bf16 %v249
      %v252 = vunpack.c.h.bf16 %v249
      %v253 = vunpack.c.l.bf16 %v250
      %v254 = vunpack.c.h.bf16 %v250
      %259 = vrot.lane.b32.xlu0 %v251, 127
      %v260 = vpop.permute.xlu0 %259
      %261 = vrot.lane.b32.xlu0 %v252, 127
      %v262 = vpop.permute.xlu0 %261
      %263 = vrot.lane.b32.xlu0 %v253, 127
      %v264 = vpop.permute.xlu0 %263
      %265 = vrot.lane.b32.xlu0 %v254, 127
      %v266 = vpop.permute.xlu0 %265
      %vm267 = vcmask 1039360
      %v268 = vsel %vm267, %v260, %v262
      %v269 = vsel %vm267, %v264, %v266
      %272 = vst [vmem:[#allocation2 + $0x10] sm:$0xff] %v268
      %273 = vst [vmem:[#allocation2 + $0x18] sm:$0xff] %v269
      %v274 = vld [vmem:[%s233] sm:$0xff]
      %v275 = vld [vmem:[%s233 + $0x8] sm:$0xff]
      %v276 = vunpack.c.l.bf16 %v274
      %v277 = vunpack.c.h.bf16 %v274
      %v278 = vunpack.c.l.bf16 %v275
      %v279 = vunpack.c.h.bf16 %v275
      %284 = vrot.lane.b32.xlu0 %v276, 126
      %v285 = vpop.permute.xlu0 %284
      %286 = vrot.lane.b32.xlu0 %v277, 126
      %v287 = vpop.permute.xlu0 %286
      %288 = vrot.lane.b32.xlu0 %v278, 126
      %v289 = vpop.permute.xlu0 %288
      %290 = vrot.lane.b32.xlu0 %v279, 126
      %v291 = vpop.permute.xlu0 %290
      %vm292 = vcmask 1031168
      %v293 = vsel %vm292, %v285, %v287
      %v294 = vsel %vm292, %v289, %v291
      %297 = vst [vmem:[#allocation2 + $0x20] sm:$0xff] %v293
      %298 = vst [vmem:[#allocation2 + $0x28] sm:$0xff] %v294
      %v299 = vld [vmem:[%s233] sm:$0xff]
      %v300 = vld [vmem:[%s233 + $0x8] sm:$0xff]
      %v301 = vunpack.c.l.bf16 %v299
      %v302 = vunpack.c.h.bf16 %v299
      %v303 = vunpack.c.l.bf16 %v300
      %v304 = vunpack.c.h.bf16 %v300
      %309 = vrot.lane.b32.xlu0 %v301, 112
      %v310 = vpop.permute.xlu0 %309
      %311 = vrot.lane.b32.xlu0 %v302, 112
      %v312 = vpop.permute.xlu0 %311
      %313 = vrot.lane.b32.xlu0 %v303, 112
      %v314 = vpop.permute.xlu0 %313
      %315 = vrot.lane.b32.xlu0 %v304, 112
      %v316 = vpop.permute.xlu0 %315
      %vm317 = vcmask 916480
      %v318 = vsel %vm317, %v310, %v312
      %v319 = vsel %vm317, %v314, %v316
      %322 = vst [vmem:[#allocation2 + $0x30] sm:$0xff] %v318
      %323 = vst [vmem:[#allocation2 + $0x38] sm:$0xff] %v319
      %v324 = vld [vmem:[%s233] sm:$0xff]
      %v325 = vld [vmem:[%s233 + $0x8] sm:$0xff]
      %v326 = vunpack.c.l.bf16 %v324
      %v327 = vunpack.c.h.bf16 %v324
      %v328 = vunpack.c.l.bf16 %v325
      %v329 = vunpack.c.h.bf16 %v325
      %334 = vrot.lane.b32.xlu0 %v326, 111
      %v335 = vpop.permute.xlu0 %334
      %336 = vrot.lane.b32.xlu0 %v327, 111
      %v337 = vpop.permute.xlu0 %336
      %338 = vrot.lane.b32.xlu0 %v328, 111
      %v339 = vpop.permute.xlu0 %338
      %340 = vrot.lane.b32.xlu0 %v329, 111
      %v341 = vpop.permute.xlu0 %340
      %vm342 = vcmask 908288
      %v343 = vsel %vm342, %v335, %v337
      %v344 = vsel %vm342, %v339, %v341
      %347 = vst [vmem:[#allocation2 + $0x40] sm:$0xff] %v343
      %348 = vst [vmem:[#allocation2 + $0x48] sm:$0xff] %v344
      %v349 = vld [vmem:[%s233] sm:$0xff]
      %v350 = vld [vmem:[%s233 + $0x8] sm:$0xff]
      %v351 = vunpack.c.l.bf16 %v349
      %v352 = vunpack.c.h.bf16 %v349
      %v353 = vunpack.c.l.bf16 %v350
      %v354 = vunpack.c.h.bf16 %v350
      %359 = vrot.lane.b32.xlu0 %v351, 110
      %v360 = vpop.permute.xlu0 %359
      %361 = vrot.lane.b32.xlu0 %v352, 110
      %v362 = vpop.permute.xlu0 %361
      %363 = vrot.lane.b32.xlu0 %v353, 110
      %v364 = vpop.permute.xlu0 %363
      %365 = vrot.lane.b32.xlu0 %v354, 110
      %v366 = vpop.permute.xlu0 %365
      %vm367 = vcmask 900096
      %v368 = vsel %vm367, %v360, %v362
      %v369 = vsel %vm367, %v364, %v366
      %372 = vst [vmem:[#allocation2 + $0x50] sm:$0xff] %v368
      %373 = vst [vmem:[#allocation2 + $0x58] sm:$0xff] %v369
      %v374 = vld [vmem:[%s233] sm:$0xff]
      %v375 = vld [vmem:[%s233 + $0x8] sm:$0xff]
      %v376 = vunpack.c.l.bf16 %v374
      %v377 = vunpack.c.h.bf16 %v374
      %v378 = vunpack.c.l.bf16 %v375
      %v379 = vunpack.c.h.bf16 %v375
      %384 = vrot.lane.b32.xlu0 %v376, 96
      %v385 = vpop.permute.xlu0 %384
      %386 = vrot.lane.b32.xlu0 %v377, 96
      %v387 = vpop.permute.xlu0 %386
      %388 = vrot.lane.b32.xlu0 %v378, 96
      %v389 = vpop.permute.xlu0 %388
      %390 = vrot.lane.b32.xlu0 %v379, 96
      %v391 = vpop.permute.xlu0 %390
      %vm392 = vcmask 785408
      %v393 = vsel %vm392, %v385, %v387
      %v394 = vsel %vm392, %v389, %v391
      %397 = vst [vmem:[#allocation2 + $0x60] sm:$0xff] %v393
      %398 = vst [vmem:[#allocation2 + $0x68] sm:$0xff] %v394
      %v399 = vld [vmem:[%s233] sm:$0xff]
      %v400 = vld [vmem:[%s233 + $0x8] sm:$0xff]
      %v401 = vunpack.c.l.bf16 %v399
      %v402 = vunpack.c.h.bf16 %v399
      %v403 = vunpack.c.l.bf16 %v400
      %v404 = vunpack.c.h.bf16 %v400
      %409 = vrot.lane.b32.xlu0 %v401, 95
      %v410 = vpop.permute.xlu0 %409
      %411 = vrot.lane.b32.xlu0 %v402, 95
      %v412 = vpop.permute.xlu0 %411
      %413 = vrot.lane.b32.xlu0 %v403, 95
      %v414 = vpop.permute.xlu0 %413
      %415 = vrot.lane.b32.xlu0 %v404, 95
      %v416 = vpop.permute.xlu0 %415
      %vm417 = vcmask 777216
      %v418 = vsel %vm417, %v410, %v412
      %v419 = vsel %vm417, %v414, %v416
      %422 = vst [vmem:[#allocation2 + $0x70] sm:$0xff] %v418
      %423 = vst [vmem:[#allocation2 + $0x78] sm:$0xff] %v419
      %v424 = vld [vmem:[%s233] sm:$0xff]
      %v425 = vld [vmem:[%s233 + $0x8] sm:$0xff]
      %v426 = vunpack.c.l.bf16 %v424
      %v427 = vunpack.c.h.bf16 %v424
      %v428 = vunpack.c.l.bf16 %v425
      %v429 = vunpack.c.h.bf16 %v425
      %434 = vrot.lane.b32.xlu0 %v426, 94
      %v435 = vpop.permute.xlu0 %434
      %436 = vrot.lane.b32.xlu0 %v427, 94
      %v437 = vpop.permute.xlu0 %436
      %438 = vrot.lane.b32.xlu0 %v428, 94
      %v439 = vpop.permute.xlu0 %438
      %440 = vrot.lane.b32.xlu0 %v429, 94
      %v441 = vpop.permute.xlu0 %440
      %vm442 = vcmask 769024
      %v443 = vsel %vm442, %v435, %v437
      %v444 = vsel %vm442, %v439, %v441
      %447 = vst [vmem:[#allocation2 + $0x80] sm:$0xff] %v443
      %448 = vst [vmem:[#allocation2 + $0x88] sm:$0xff] %v444
      %v449 = vld [vmem:[%s2] sm:$0xff]
      %v450 = vld [vmem:[%s2 + $0x8] sm:$0xff]
      %v451 = vld [vmem:[#allocation2] sm:$0xff]
      %v452 = vld [vmem:[#allocation2 + $0x8] sm:$0xff]
      %v453 = vld [vmem:[#allocation2 + $0x10] sm:$0xff]
      %v454 = vld [vmem:[#allocation2 + $0x18] sm:$0xff]
      %v455 = vld [vmem:[#allocation2 + $0x20] sm:$0xff]
      %v456 = vld [vmem:[#allocation2 + $0x28] sm:$0xff]
      %v457 = vld [vmem:[#allocation2 + $0x30] sm:$0xff]
      %v458 = vld [vmem:[#allocation2 + $0x38] sm:$0xff]
      %v459 = vld [vmem:[#allocation2 + $0x40] sm:$0xff]
      %v460 = vld [vmem:[#allocation2 + $0x48] sm:$0xff]
      %v461 = vld [vmem:[#allocation2 + $0x50] sm:$0xff]
      %v462 = vld [vmem:[#allocation2 + $0x58] sm:$0xff]
      %v463 = vld [vmem:[#allocation2 + $0x60] sm:$0xff]
      %v464 = vld [vmem:[#allocation2 + $0x68] sm:$0xff]
      %v465 = vld [vmem:[#allocation2 + $0x70] sm:$0xff]
      %v466 = vld [vmem:[#allocation2 + $0x78] sm:$0xff]
      %v467 = vld [vmem:[#allocation2 + $0x80] sm:$0xff]
      %v468 = vld [vmem:[#allocation2 + $0x88] sm:$0xff]
      %v469 = vld [vmem:[%s3] sm:$0xff]
      %471 = vset.pattern.permute.xlu0 0
      %472 = vperm.xlu0 %471, %v469
      %v473 = vpop.permute.xlu0 %472
      %vm475 = vcmask 130048
      %v477 = vsel %vm475, %v450, 0
      %479 = vmatprep.subr.mxu0 0.0
      %480 = vmatpush1.msra.mxu0 %v466
      %481 = vmatprep.subr.mxu0 0.0
      %482 = vmatpush1.msra.mxu0 %v465
      %483 = vmatprep.subr.mxu0 0.0
      %484 = vmatpush1.msra.mxu0 %v464
      %485 = vmatprep.subr.mxu0 0.0
      %486 = vmatpush1.msra.mxu0 %v463
      %487 = vmatprep.subr.mxu0 0.0
      %488 = vmatpush1.msra.mxu0 %v462
      %489 = vmatprep.subr.mxu0 0.0
      %490 = vmatpush1.msra.mxu0 %v461
      %491 = vmatprep.subr.mxu0 0.0
      %492 = vmatpush1.msra.mxu0 %v460
      %493 = vmatprep.subr.mxu0 0.0
      %494 = vmatpush1.msra.mxu0 %v459
      %495 = vmatprep.subr.mxu0 0.0
      %496 = vmatpush1.msra.mxu0 %v458
      %497 = vmatprep.subr.mxu0 0.0
      %498 = vmatpush1.msra.mxu0 %v457
      %499 = vmatprep.subr.mxu0 0.0
      %500 = vmatpush1.msra.mxu0 %v456
      %501 = vmatprep.subr.mxu0 0.0
      %502 = vmatpush1.msra.mxu0 %v455
      %503 = vmatprep.subr.mxu0 0.0
      %504 = vmatpush1.msra.mxu0 %v454
      %505 = vmatprep.subr.mxu0 0.0
      %506 = vmatpush1.msra.mxu0 %v453
      %507 = vmatprep.subr.mxu0 0.0
      %508 = vmatpush1.msra.mxu0 %v452
      %509 = vmatprep.subr.mxu0 0.0
      %510 = vmatpush1.msra.mxu0 %v451
      %511 = vmatprep.subr.mxu0 0.0
      %512 = vmatpush2.msra.mxu0 0.0
      %513 = vmatprep.subr.mxu0 0.0
      %514 = vmatpush2.msra.mxu0 0.0
      %515 = vmatprep.subr.mxu0 0.0
      %516 = vmatpush2.msra.mxu0 0.0
      %517 = vmatprep.subr.mxu0 0.0
      %518 = vmatpush2.msra.mxu0 0.0
      %519 = vmatprep.subr.mxu0 0.0
      %520 = vmatpush2.msra.mxu0 0.0
      %521 = vmatprep.subr.mxu0 0.0
      %522 = vmatpush2.msra.mxu0 0.0
      %523 = vmatprep.subr.mxu0 0.0
      %524 = vmatpush2.msra.mxu0 0.0
      %525 = vmatprep.subr.mxu0 0.0
      %526 = vmatpush2.msra.mxu0 0.0
      %527 = vmatprep.subr.mxu0 0.0
      %528 = vmatpush2.msra.mxu0 0.0
      %529 = vmatprep.subr.mxu0 0.0
      %530 = vmatpush2.msra.mxu0 0.0
      %531 = vmatprep.subr.mxu0 0.0
      %532 = vmatpush2.msra.mxu0 0.0
      %533 = vmatprep.subr.mxu0 0.0
      %534 = vmatpush2.msra.mxu0 0.0
      %535 = vmatprep.subr.mxu0 0.0
      %536 = vmatpush2.msra.mxu0 0.0
      %537 = vmatprep.subr.mxu0 0.0
      %538 = vmatpush2.msra.mxu0 0.0
      %539 = vmatprep.subr.mxu0 0.0
      %540 = vmatpush2.msra.mxu0 %v468
      %541 = vmatprep.subr.mxu0 0.0
      %542 = vmatpush2.msra.mxu0 %v467
      %543 = vmatprep.mubr.f32.mxu0 %v477
      %544 = vmatmul.mubr.f32.gmra.mxu0 %v449
      %v545 = vpop.f32.mrf.mxu0
      %v546 = vadd.f32 %v473, %v545
      %v547 = vpop.f32.mrf.mxu0
      %548 = vdwg.mxu0
      %vm549 = vcmp.ge.f32.partialorder %v546, 0.0
      %v550 = vmul.f32 %v546, 0.2
      %v551 = vsel %vm549, %v546, %v550
      %v552 = vmul.f32 %v551, 1.4142135
      %v553 = vld [vmem:[%s238] sm:$0xff]
      %v554 = vld [vmem:[%s238 + $0x10] sm:$0xff]
      %555 = vst [vmem:[#allocation3] sm:$0xff] %v553
      %556 = vst [vmem:[#allocation3 + $0x8] sm:$0xff] %v554
      %v557 = vld [vmem:[%s238] sm:$0xff]
      %v558 = vld [vmem:[%s238 + $0x8] sm:$0xff]
      %v559 = vld [vmem:[%s238 + $0x10] sm:$0xff]
      %v560 = vld [vmem:[%s238 + $0x18] sm:$0xff]
      %565 = vrot.lane.b32.xlu0 %v557, 127
      %v566 = vpop.permute.xlu0 %565
      %567 = vrot.lane.b32.xlu0 %v558, 127
      %v568 = vpop.permute.xlu0 %567
      %569 = vrot.lane.b32.xlu0 %v559, 127
      %v570 = vpop.permute.xlu0 %569
      %571 = vrot.lane.b32.xlu0 %v560, 127
      %v572 = vpop.permute.xlu0 %571
      %v573 = vsel %vm267, %v566, %v568
      %v574 = vsel %vm267, %v570, %v572
      %577 = vst [vmem:[#allocation3 + $0x10] sm:$0xff] %v573
      %578 = vst [vmem:[#allocation3 + $0x18] sm:$0xff] %v574
      %v579 = vld [vmem:[%s238] sm:$0xff]
      %v580 = vld [vmem:[%s238 + $0x8] sm:$0xff]
      %v581 = vld [vmem:[%s238 + $0x10] sm:$0xff]
      %v582 = vld [vmem:[%s238 + $0x18] sm:$0xff]
      %587 = vrot.lane.b32.xlu0 %v579, 112
      %v588 = vpop.permute.xlu0 %587
      %589 = vrot.lane.b32.xlu0 %v580, 112
      %v590 = vpop.permute.xlu0 %589
      %591 = vrot.lane.b32.xlu0 %v581, 112
      %v592 = vpop.permute.xlu0 %591
      %593 = vrot.lane.b32.xlu0 %v582, 112
      %v594 = vpop.permute.xlu0 %593
      %v595 = vsel %vm317, %v588, %v590
      %v596 = vsel %vm317, %v592, %v594
      %599 = vst [vmem:[#allocation3 + $0x20] sm:$0xff] %v595
      %600 = vst [vmem:[#allocation3 + $0x28] sm:$0xff] %v596
      %v601 = vld [vmem:[%s238] sm:$0xff]
      %v602 = vld [vmem:[%s238 + $0x8] sm:$0xff]
      %v603 = vld [vmem:[%s238 + $0x10] sm:$0xff]
      %v604 = vld [vmem:[%s238 + $0x18] sm:$0xff]
      %609 = vrot.lane.b32.xlu0 %v601, 111
      %v610 = vpop.permute.xlu0 %609
      %611 = vrot.lane.b32.xlu0 %v602, 111
      %v612 = vpop.permute.xlu0 %611
      %613 = vrot.lane.b32.xlu0 %v603, 111
      %v614 = vpop.permute.xlu0 %613
      %615 = vrot.lane.b32.xlu0 %v604, 111
      %v616 = vpop.permute.xlu0 %615
      %v617 = vsel %vm342, %v610, %v612
      %v618 = vsel %vm342, %v614, %v616
      %621 = vst [vmem:[#allocation3 + $0x30] sm:$0xff] %v617
      %622 = vst [vmem:[#allocation3 + $0x38] sm:$0xff] %v618
      %v623 = vld [vmem:[%s4] sm:$0xff]
      %v624 = vld [vmem:[#allocation3] sm:$0xff]
      %v625 = vld [vmem:[#allocation3 + $0x8] sm:$0xff]
      %v626 = vld [vmem:[#allocation3 + $0x10] sm:$0xff]
      %v627 = vld [vmem:[#allocation3 + $0x18] sm:$0xff]
      %v628 = vld [vmem:[#allocation3 + $0x20] sm:$0xff]
      %v629 = vld [vmem:[#allocation3 + $0x28] sm:$0xff]
      %v630 = vld [vmem:[#allocation3 + $0x30] sm:$0xff]
      %v631 = vld [vmem:[#allocation3 + $0x38] sm:$0xff]
      %vm632 = vcmask 523264
      %v634 = vsel %vm632, %v623, 0
      %636 = vmatprep.subr.mxu0 0.0
      %637 = vmatpush1.msra.mxu0 0.0
      %638 = vmatprep.subr.mxu0 0.0
      %639 = vmatpush1.msra.mxu0 0.0
      %640 = vmatprep.subr.mxu0 0.0
      %641 = vmatpush1.msra.mxu0 0.0
      %642 = vmatprep.subr.mxu0 0.0
      %643 = vmatpush1.msra.mxu0 0.0
      %644 = vmatprep.subr.mxu0 0.0
      %645 = vmatpush1.msra.mxu0 0.0
      %646 = vmatprep.subr.mxu0 0.0
      %647 = vmatpush1.msra.mxu0 0.0
      %648 = vmatprep.subr.mxu0 0.0
      %649 = vmatpush1.msra.mxu0 0.0
      %650 = vmatprep.subr.mxu0 0.0
      %651 = vmatpush1.msra.mxu0 0.0
      %652 = vmatprep.subr.mxu0 0.0
      %653 = vmatpush1.msra.mxu0 %v631
      %654 = vmatprep.subr.mxu0 0.0
      %655 = vmatpush1.msra.mxu0 %v630
      %656 = vmatprep.subr.mxu0 0.0
      %657 = vmatpush1.msra.mxu0 %v629
      %658 = vmatprep.subr.mxu0 0.0
      %659 = vmatpush1.msra.mxu0 %v628
      %660 = vmatprep.subr.mxu0 0.0
      %661 = vmatpush1.msra.mxu0 %v627
      %662 = vmatprep.subr.mxu0 0.0
      %663 = vmatpush1.msra.mxu0 %v626
      %664 = vmatprep.subr.mxu0 0.0
      %665 = vmatpush1.msra.mxu0 %v625
      %666 = vmatprep.subr.mxu0 0.0
      %667 = vmatpush1.msra.mxu0 %v624
      %668 = vmatprep.subr.mxu0 0.0
      %669 = vmatpush2.msra.mxu0 0.0
      %670 = vmatprep.subr.mxu0 0.0
      %671 = vmatpush2.msra.mxu0 0.0
      %672 = vmatprep.subr.mxu0 0.0
      %673 = vmatpush2.msra.mxu0 0.0
      %674 = vmatprep.subr.mxu0 0.0
      %675 = vmatpush2.msra.mxu0 0.0
      %676 = vmatprep.subr.mxu0 0.0
      %677 = vmatpush2.msra.mxu0 0.0
      %678 = vmatprep.subr.mxu0 0.0
      %679 = vmatpush2.msra.mxu0 0.0
      %680 = vmatprep.subr.mxu0 0.0
      %681 = vmatpush2.msra.mxu0 0.0
      %682 = vmatprep.subr.mxu0 0.0
      %683 = vmatpush2.msra.mxu0 0.0
      %684 = vmatprep.subr.mxu0 0.0
      %685 = vmatpush2.msra.mxu0 0.0
      %686 = vmatprep.subr.mxu0 0.0
      %687 = vmatpush2.msra.mxu0 0.0
      %688 = vmatprep.subr.mxu0 0.0
      %689 = vmatpush2.msra.mxu0 0.0
      %690 = vmatprep.subr.mxu0 0.0
      %691 = vmatpush2.msra.mxu0 0.0
      %692 = vmatprep.subr.mxu0 0.0
      %693 = vmatpush2.msra.mxu0 0.0
      %694 = vmatprep.subr.mxu0 0.0
      %695 = vmatpush2.msra.mxu0 0.0
      %696 = vmatprep.subr.mxu0 0.0
      %697 = vmatpush2.msra.mxu0 0.0
      %698 = vmatprep.subr.mxu0 0.0
      %699 = vmatpush2.msra.mxu0 0.0
      %700 = vmatprep.mubr.f32.mxu0 0.0
      %701 = vmatmul.mubr.f32.gmra.mxu0 %v634
      %v702 = vpop.f32.mrf.mxu0
      %v703 = vadd.f32 0.0, %v702
      %v704 = vpop.f32.mrf.mxu0
      %705 = vdwg.mxu0
      %v706 = vadd.f32 %v552, %v703
      %v707 = vmul.f32 %v706, 0.70710677
      %708 = vst [vmem:[%s242] sm:$0xff] %v707
      %p709 = scmp.lt.s32.totalorder %s16, 1
      %s710 = scalar_select %p709, %s16, 1
      %s711 = smul.addr %s710, 8
      %s712 = scalar_lea.vmem %s5, %s711
      // Predicated region
      $region41: #{res_block_forward.3} parent=39 // pred_check
        %p713 = pneg %p149
      $region42: #{res_block_forward.3} parent=39 // pred_check_branch
        %715 = sbr.rel (%p713) target = $region44
      $region43: #{res_block_forward.3} parent=39 // pred_region
        _
      $region44: #{res_block_forward.3} parent=39 // pred_fallthru
        _
    $region40: #{res_block_forward.3} parent=5 // pred_fallthru
      _
    %p716 = scmp.le.s32.totalorder 2, %s11
    // Predicated region
    $region45: #{res_block_forward.3} parent=5 // pred_check
      %p717 = pneg %p716
    $region46: #{res_block_forward.3} parent=5 // pred_check_branch
      %719 = sbr.rel (%p717) target = $region48
    $region47: #{res_block_forward.3} parent=5 // pred_region
      %s720 = ssub.s32 %s11, 2
      // Predicated region
      $region49: #{res_block_forward.3} parent=47 // pred_check
        %p721 = pneg %p155
      $region50: #{res_block_forward.3} parent=47 // pred_check_branch
        %723 = sbr.rel (%p721) target = $region52
      $region51: #{res_block_forward.3} parent=47 // pred_region
        %p724 = scmp.lt.s32.totalorder %s17, 1
        %s725 = scalar_select %p724, %s17, 1
        %s726 = smul.addr %s725, 8
        %s727 = scalar_lea.vmem %s5, %s726
      $region52: #{res_block_forward.3} parent=47 // pred_fallthru
        _
    $region48: #{res_block_forward.3} parent=5 // pred_fallthru
      _
  $region6: #{res_block_forward.3} parent=0 // loop_footer
    %s15 = sadd.s32 1, %s11
  $region7: #{res_block_forward.3} parent=0 // loop_footer_branch
    %10 = sbr.rel target = $region3
  $region8: #{res_block_forward.3} parent=0 // loop_exit
    _

</llo_original>
